<compile_context>
chip_gen: v7x
topology: tpu7x:2x2x1
jax: 0.10.0
libtpu: 0.0.40
codegen_flags: <defaults>
</compile_context>

<pallas_src>
import functools

import jax
import jax.numpy as jnp
import numpy as np
from jax.experimental import pallas as pl
from jax.experimental.pallas import tpu as pltpu


# ---------------------------------------------------------------------------
# Pallas kernel: one single-layer LSTM over the whole sequence for one group.
# ---------------------------------------------------------------------------
def _group_lstm_kernel(x_ref, wih_ref, whh_ref, b_ref, o_ref, xp_sc, *, batch):
    """Block shapes (leading dim = group, selected by the grid over groups):

      x_ref:   (1, T*B, I)   time-major rows, row index = t*B + b
      wih_ref: (1, I, 4H)    input weights (PyTorch gate order [i, f, g, o])
      whh_ref: (1, H, 4H)    recurrent weights
      b_ref:   (1, 1, 4H)    b_ih + b_hh folded
      o_ref:   (1, T*B, H)   hidden states for every timestep
      xp_sc:   VMEM (T*B, 4H) scratch: precomputed x @ W_ih + bias
    """
    B = batch
    tb = x_ref.shape[1]
    T = tb // B
    H = whh_ref.shape[1]

    # Hoist the non-recurrent input projection out of the time loop:
    # one (T*B, I) x (I, 4H) matmul instead of T tiny per-step matmuls.
    xp_sc[...] = (
        jnp.dot(x_ref[0], wih_ref[0], preferred_element_type=jnp.float32)
        + b_ref[0]
    )

    w_hh = whh_ref[0]

    def step(t, carry):
        h, c = carry
        row = t * B
        gates = xp_sc[pl.ds(row, B), :] + jnp.dot(
            h, w_hh, preferred_element_type=jnp.float32)
        i_g = jax.nn.sigmoid(gates[:, 0 * H:1 * H])
        f_g = jax.nn.sigmoid(gates[:, 1 * H:2 * H])
        g_g = jnp.tanh(gates[:, 2 * H:3 * H])
        o_g = jax.nn.sigmoid(gates[:, 3 * H:4 * H])
        c_new = f_g * c + i_g * g_g
        h_new = o_g * jnp.tanh(c_new)
        o_ref[0, pl.ds(row, B), :] = h_new
        return h_new, c_new

    h0 = jnp.zeros((B, H), jnp.float32)
    c0 = jnp.zeros((B, H), jnp.float32)
    # Recurrence: sequential in-kernel loop; keep h/c in vregs via the carry.
    jax.lax.fori_loop(0, T, step, (h0, c0), unroll=T <= 16)


def group_lstm_pallas(xg, w_ih, w_hh, bias, batch):
    """Run G independent single-layer LSTMs in one pallas_call.

    xg:   [G, T*B, I] float32 (row = t*B + b)
    w_ih: [G, I, 4H]; w_hh: [G, H, 4H]; bias: [G, 1, 4H]
    returns [G, T*B, H] float32
    """
    G, TB, I = xg.shape
    H = w_hh.shape[1]
    kernel = functools.partial(_group_lstm_kernel, batch=batch)

    return pl.pallas_call(
        kernel,
        out_shape=jax.ShapeDtypeStruct((G, TB, H), jnp.float32),
        grid_spec=pltpu.PrefetchScalarGridSpec(
            num_scalar_prefetch=0,
            grid=(G,),
            in_specs=[
                pl.BlockSpec((1, TB, I), lambda g: (g, 0, 0)),
                pl.BlockSpec((1, I, 4 * H), lambda g: (g, 0, 0)),
                pl.BlockSpec((1, H, 4 * H), lambda g: (g, 0, 0)),
                pl.BlockSpec((1, 1, 4 * H), lambda g: (g, 0, 0)),
            ],
            out_specs=pl.BlockSpec((1, TB, H), lambda g: (g, 0, 0)),
            scratch_shapes=[
                pltpu.VMEM((TB, 4 * H), jnp.float32),  # precomputed x-projection
            ],
        ),
        compiler_params=pltpu.CompilerParams(
            # Groups are independent -> shard over the 2 TensorCores on v7x.
            dimension_semantics=("parallel",)),
    )(xg, w_ih, w_hh, bias)


# ---------------------------------------------------------------------------
# G_CLstm module logic (glue in plain JAX, LSTM hot path in Pallas).
# ---------------------------------------------------------------------------
def make_snd_layer_index(channel, feature, groups):
    step = feature * channel // groups
    idx = []
    for i in range(channel // groups):
        for g in range(groups):
            for f in range(feature):
                idx.append(i * feature + g * step + f)
    return np.array(idx, dtype=np.int32)


def init_g_clstm_params(key, channel, feature, groups):
    """Deterministic synthetic init matching nn.LSTM parameter shapes.

    Returns a tuple of two layer dicts with stacked per-group arrays:
      w_ih [G, I, 4H], w_hh [G, H, 4H], bias [G, 1, 4H] (b_ih + b_hh folded).
    """
    step = feature * channel // groups
    H = step
    bound = 1.0 / np.sqrt(H)
    keys = jax.random.split(key, 2 * groups * 4)
    k = 0
    layers = []
    for _layer in range(2):
        wih_l, whh_l, b_l = [], [], []
        for _g in range(groups):
            w_ih = jax.random.uniform(keys[k], (4 * H, step), jnp.float32, -bound, bound); k += 1
            w_hh = jax.random.uniform(keys[k], (4 * H, H), jnp.float32, -bound, bound); k += 1
            b_ih = jax.random.uniform(keys[k], (4 * H,), jnp.float32, -bound, bound); k += 1
            b_hh = jax.random.uniform(keys[k], (4 * H,), jnp.float32, -bound, bound); k += 1
            wih_l.append(jnp.transpose(w_ih))              # [I, 4H]
            whh_l.append(jnp.transpose(w_hh))              # [H, 4H]
            b_l.append((b_ih + b_hh).reshape(1, 4 * H))    # [1, 4H]
        layers.append({
            "w_ih": jnp.stack(wih_l),
            "w_hh": jnp.stack(whh_l),
            "bias": jnp.stack(b_l),
        })
    return tuple(layers)


@functools.partial(jax.jit, static_argnums=(2, 3, 4))
def g_clstm_forward(x, params, channel, feature, groups):
    """x: [B, C, T, F] -> [B, C, T, F] (bidirectional=False path)."""
    # TODO(synk): bidirectional=True branch (extra Linear 640->320) not
    # implemented; the module default is bidirectional=False.
    B, C, T, F = x.shape
    G = groups
    step = F * C // G
    H = step
    snd_idx = jnp.asarray(make_snd_layer_index(C, F, G))

    # [B, C, T, F] -> [B, T, C*F] (same flattening as the PyTorch reference).
    flat = jnp.transpose(x, (0, 2, 1, 3)).reshape(B, T, C * F)

    def to_groups(f2d):   # [B, T, G*step] -> [G, T*B, step]
        y = f2d.reshape(B, T, G, step)
        y = jnp.transpose(y, (2, 1, 0, 3))        # [G, T, B, step]
        return y.reshape(G, T * B, step)

    def from_groups(yg):  # [G, T*B, H] -> [B, T, G*H]
        y = yg.reshape(G, T, B, H)
        y = jnp.transpose(y, (2, 1, 0, 3))        # [B, T, G, H]
        return y.reshape(B, T, G * H)

    p1, p2 = params

    # Layer 1: all groups fused into one pallas_call.
    y1 = group_lstm_pallas(to_groups(flat), p1["w_ih"], p1["w_hh"], p1["bias"], B)
    y1 = from_groups(y1)                          # [B, T, C*F]

    # Channel reshuffle (index_select along the feature dim), then layer 2.
    y1 = jnp.take(y1, snd_idx, axis=2)
    y2 = group_lstm_pallas(to_groups(y1), p2["w_ih"], p2["w_hh"], p2["bias"], B)
    out = from_groups(y2)                         # [B, T, C*F]

    out = out.reshape(B, T, C, F)
    return jnp.transpose(out, (0, 2, 1, 3))       # [B, C, T, F]


# ---------------------------------------------------------------------------
# Pure-JAX reference (lax.scan LSTMs) for a correctness check.
# ---------------------------------------------------------------------------
def lstm_ref(x, w_ih, w_hh, bias):
    B, T, I = x.shape
    H = w_hh.shape[0]

    def step(carry, x_t):
        h, c = carry
        gates = x_t @ w_ih + h @ w_hh + bias
        i_g = jax.nn.sigmoid(gates[:, 0 * H:1 * H])
        f_g = jax.nn.sigmoid(gates[:, 1 * H:2 * H])
        g_g = jnp.tanh(gates[:, 2 * H:3 * H])
        o_g = jax.nn.sigmoid(gates[:, 3 * H:4 * H])
        c_new = f_g * c + i_g * g_g
        h_new = o_g * jnp.tanh(c_new)
        return (h_new, c_new), h_new

    h0 = jnp.zeros((B, H), jnp.float32)
    c0 = jnp.zeros((B, H), jnp.float32)
    _, hs = jax.lax.scan(step, (h0, c0), jnp.transpose(x, (1, 0, 2)))
    return jnp.transpose(hs, (1, 0, 2))


def g_clstm_ref(x, params, channel, feature, groups):
    B, C, T, F = x.shape
    step = F * C // groups
    snd_idx = jnp.asarray(make_snd_layer_index(C, F, groups))
    p1, p2 = params

    out = jnp.transpose(x, (0, 2, 1, 3)).reshape(B, T, C * F)
    outs = [lstm_ref(out[:, :, g * step:(g + 1) * step],
                     p1["w_ih"][g], p1["w_hh"][g], p1["bias"][g])
            for g in range(groups)]
    out = jnp.concatenate(outs, axis=2)
    out = jnp.take(out, snd_idx, axis=2)
    outs = [lstm_ref(out[:, :, g * step:(g + 1) * step],
                     p2["w_ih"][g], p2["w_hh"][g], p2["bias"][g])
            for g in range(groups)]
    out = jnp.concatenate(outs, axis=2)
    return jnp.transpose(out.reshape(B, T, C, F), (0, 2, 1, 3))


if __name__ == "__main__":
    # Small shapes consistent with the module: step = feature*channel//groups = 32.
    batch, channel, time, feature, groups = 2, 4, 8, 16, 2

    key = jax.random.PRNGKey(0)
    k_x, k_p = jax.random.split(key)
    x = jax.random.normal(k_x, (batch, channel, time, feature), jnp.float32)
    params = init_g_clstm_params(k_p, channel, feature, groups)

    out = g_clstm_forward(x, params, channel, feature, groups)
    out = jax.block_until_ready(out)
    assert out.shape == (batch, channel, time, feature), out.shape

    # Correctness check of the full two-layer grouped forward vs pure-JAX scan.
    ref = g_clstm_ref(x, params, channel, feature, groups)
    np.testing.assert_allclose(np.asarray(out), np.asarray(ref),
                               rtol=1e-4, atol=1e-5)

    print("KERNEL_OK")
</pallas_src>

<mosaic_0001>
module attributes {stable_mosaic.version = 11 : i64} {
  func.func @_group_lstm_kernel(%arg0: i32, %arg1: memref<1x16x32xf32, #tpu.memory_space<vmem>>, %arg2: memref<1x32x128xf32, #tpu.memory_space<vmem>>, %arg3: memref<1x32x128xf32, #tpu.memory_space<vmem>>, %arg4: memref<1x1x128xf32, #tpu.memory_space<vmem>>, %arg5: memref<1x16x32xf32, #tpu.memory_space<vmem>>, %arg6: memref<16x128xf32, #tpu.memory_space<vmem>>) attributes {dimension_semantics = [#tpu.dimension_semantics<parallel>], iteration_bounds = array<i64: 2>, scalar_prefetch = 0 : i64, scratch_operands = 1 : i64, tpu.core_type = #tpu.core_type<tc>, window_params = [{transform_indices = @transform_0, window_bounds = array<i64: 1, 16, 32>}, {transform_indices = @transform_1, window_bounds = array<i64: 1, 32, 128>}, {transform_indices = @transform_2, window_bounds = array<i64: 1, 32, 128>}, {transform_indices = @transform_3, window_bounds = array<i64: 1, 1, 128>}, {transform_indices = @transform_4, window_bounds = array<i64: 1, 16, 32>}]} {
    %c0 = arith.constant 0 : index
    %c0_0 = arith.constant 0 : index
    %c0_1 = arith.constant 0 : index
    %0 = vector.load %arg1[%c0, %c0_0, %c0_1] : memref<1x16x32xf32, #tpu.memory_space<vmem>>, vector<1x16x32xf32>
    %1 = vector.shape_cast %0 : vector<1x16x32xf32> to vector<16x32xf32>
    %c0_2 = arith.constant 0 : index
    %c0_3 = arith.constant 0 : index
    %c0_4 = arith.constant 0 : index
    %2 = vector.load %arg2[%c0_2, %c0_3, %c0_4] : memref<1x32x128xf32, #tpu.memory_space<vmem>>, vector<1x32x128xf32>
    %3 = vector.shape_cast %2 : vector<1x32x128xf32> to vector<32x128xf32>
    %cst = arith.constant dense<0.000000e+00> : vector<16x128xf32>
    %4 = tpu.matmul %1, %3, %cst {dimension_numbers = #tpu.dot_dimension_numbers<[1], [0], [0], [1], [0, 0, 1, 1], [], []>} : vector<16x32xf32>, vector<32x128xf32>, vector<16x128xf32> -> vector<16x128xf32>
    %c0_5 = arith.constant 0 : index
    %c0_6 = arith.constant 0 : index
    %c0_7 = arith.constant 0 : index
    %5 = vector.load %arg4[%c0_5, %c0_6, %c0_7] : memref<1x1x128xf32, #tpu.memory_space<vmem>>, vector<1x1x128xf32>
    %6 = vector.shape_cast %5 : vector<1x1x128xf32> to vector<1x128xf32>
    %7 = vector.broadcast %6 : vector<1x128xf32> to vector<16x128xf32>
    %8 = arith.addf %4, %7 : vector<16x128xf32>
    %c0_8 = arith.constant 0 : index
    %c0_9 = arith.constant 0 : index
    %9 = vector.load %arg6[%c0_8, %c0_9] : memref<16x128xf32, #tpu.memory_space<vmem>>, vector<16x128xf32>
    tpu.vector_store %arg6[%c0_8, %c0_9], %8 {strides = array<i32>} : memref<16x128xf32, #tpu.memory_space<vmem>>, vector<16x128xf32>,
    %c0_10 = arith.constant 0 : index
    %c0_11 = arith.constant 0 : index
    %c0_12 = arith.constant 0 : index
    %10 = vector.load %arg3[%c0_10, %c0_11, %c0_12] : memref<1x32x128xf32, #tpu.memory_space<vmem>>, vector<1x32x128xf32>
    %11 = vector.shape_cast %10 : vector<1x32x128xf32> to vector<32x128xf32>
    %cst_13 = arith.constant 0.000000e+00 : f32
    %12 = vector.broadcast %cst_13 : f32 to vector<2x32xf32>
    %cst_14 = arith.constant 0.000000e+00 : f32
    %13 = vector.broadcast %cst_14 : f32 to vector<2x32xf32>
    %c0_i32 = arith.constant 0 : i32
    %c2_i32 = arith.constant 2 : i32
    %14 = arith.muli %c0_i32, %c2_i32 : i32
    %15 = arith.index_cast %14 : i32 to index
    %c0_15 = arith.constant 0 : index
    %16 = vector.load %arg6[%15, %c0_15] : memref<16x128xf32, #tpu.memory_space<vmem>>, vector<2x128xf32>
    %cst_16 = arith.constant dense<0.000000e+00> : vector<2x128xf32>
    %17 = tpu.matmul %12, %11, %cst_16 {dimension_numbers = #tpu.dot_dimension_numbers<[1], [0], [0], [1], [0, 0, 1, 1], [], []>} : vector<2x32xf32>, vector<32x128xf32>, vector<2x128xf32> -> vector<2x128xf32>
    %18 = arith.addf %16, %17 : vector<2x128xf32>
    %19 = vector.extract_strided_slice %18 {offsets = [0, 0], sizes = [2, 32], strides = [1, 1]} : vector<2x128xf32> to vector<2x32xf32>
    %20 = arith.negf %19 : vector<2x32xf32>
    %21 = math.exp %20 : vector<2x32xf32>
    %cst_17 = arith.constant 1.000000e+00 : f32
    %22 = vector.broadcast %cst_17 : f32 to vector<2x32xf32>
    %23 = arith.addf %22, %21 : vector<2x32xf32>
    %24 = arith.divf %22, %23 : vector<2x32xf32>
    %25 = vector.extract_strided_slice %18 {offsets = [0, 32], sizes = [2, 32], strides = [1, 1]} : vector<2x128xf32> to vector<2x32xf32>
    %26 = arith.negf %25 : vector<2x32xf32>
    %27 = math.exp %26 : vector<2x32xf32>
    %cst_18 = arith.constant 1.000000e+00 : f32
    %28 = vector.broadcast %cst_18 : f32 to vector<2x32xf32>
    %29 = arith.addf %28, %27 : vector<2x32xf32>
    %30 = arith.divf %28, %29 : vector<2x32xf32>
    %31 = vector.extract_strided_slice %18 {offsets = [0, 64], sizes = [2, 32], strides = [1, 1]} : vector<2x128xf32> to vector<2x32xf32>
    %32 = math.tanh %31 : vector<2x32xf32>
    %33 = vector.extract_strided_slice %18 {offsets = [0, 96], sizes = [2, 32], strides = [1, 1]} : vector<2x128xf32> to vector<2x32xf32>
    %34 = arith.negf %33 : vector<2x32xf32>
    %35 = math.exp %34 : vector<2x32xf32>
    %cst_19 = arith.constant 1.000000e+00 : f32
    %36 = vector.broadcast %cst_19 : f32 to vector<2x32xf32>
    %37 = arith.addf %36, %35 : vector<2x32xf32>
    %38 = arith.divf %36, %37 : vector<2x32xf32>
    %39 = arith.mulf %30, %13 : vector<2x32xf32>
    %40 = arith.mulf %24, %32 : vector<2x32xf32>
    %41 = arith.addf %39, %40 : vector<2x32xf32>
    %42 = math.tanh %41 : vector<2x32xf32>
    %43 = arith.mulf %38, %42 : vector<2x32xf32>
    %c0_20 = arith.constant 0 : index
    %44 = arith.index_cast %14 : i32 to index
    %c0_21 = arith.constant 0 : index
    %45 = vector.load %arg5[%c0_20, %44, %c0_21] : memref<1x16x32xf32, #tpu.memory_space<vmem>>, vector<1x2x32xf32>
    %46 = vector.shape_cast %45 : vector<1x2x32xf32> to vector<2x32xf32>
    %47 = vector.shape_cast %43 : vector<2x32xf32> to vector<1x2x32xf32>
    tpu.vector_store %arg5[%c0_20, %44, %c0_21], %47 {strides = array<i32>} : memref<1x16x32xf32, #tpu.memory_space<vmem>>, vector<1x2x32xf32>,
    %c1_i32 = arith.constant 1 : i32
    %c2_i32_22 = arith.constant 2 : i32
    %48 = arith.muli %c1_i32, %c2_i32_22 : i32
    %49 = arith.index_cast %48 : i32 to index
    %c0_23 = arith.constant 0 : index
    %50 = vector.load %arg6[%49, %c0_23] : memref<16x128xf32, #tpu.memory_space<vmem>>, vector<2x128xf32>
    %cst_24 = arith.constant dense<0.000000e+00> : vector<2x128xf32>
    %51 = tpu.matmul %43, %11, %cst_24 {dimension_numbers = #tpu.dot_dimension_numbers<[1], [0], [0], [1], [0, 0, 1, 1], [], []>} : vector<2x32xf32>, vector<32x128xf32>, vector<2x128xf32> -> vector<2x128xf32>
    %52 = arith.addf %50, %51 : vector<2x128xf32>
    %53 = vector.extract_strided_slice %52 {offsets = [0, 0], sizes = [2, 32], strides = [1, 1]} : vector<2x128xf32> to vector<2x32xf32>
    %54 = arith.negf %53 : vector<2x32xf32>
    %55 = math.exp %54 : vector<2x32xf32>
    %cst_25 = arith.constant 1.000000e+00 : f32
    %56 = vector.broadcast %cst_25 : f32 to vector<2x32xf32>
    %57 = arith.addf %56, %55 : vector<2x32xf32>
    %58 = arith.divf %56, %57 : vector<2x32xf32>
    %59 = vector.extract_strided_slice %52 {offsets = [0, 32], sizes = [2, 32], strides = [1, 1]} : vector<2x128xf32> to vector<2x32xf32>
    %60 = arith.negf %59 : vector<2x32xf32>
    %61 = math.exp %60 : vector<2x32xf32>
    %cst_26 = arith.constant 1.000000e+00 : f32
    %62 = vector.broadcast %cst_26 : f32 to vector<2x32xf32>
    %63 = arith.addf %62, %61 : vector<2x32xf32>
    %64 = arith.divf %62, %63 : vector<2x32xf32>
    %65 = vector.extract_strided_slice %52 {offsets = [0, 64], sizes = [2, 32], strides = [1, 1]} : vector<2x128xf32> to vector<2x32xf32>
    %66 = math.tanh %65 : vector<2x32xf32>
    %67 = vector.extract_strided_slice %52 {offsets = [0, 96], sizes = [2, 32], strides = [1, 1]} : vector<2x128xf32> to vector<2x32xf32>
    %68 = arith.negf %67 : vector<2x32xf32>
    %69 = math.exp %68 : vector<2x32xf32>
    %cst_27 = arith.constant 1.000000e+00 : f32
    %70 = vector.broadcast %cst_27 : f32 to vector<2x32xf32>
    %71 = arith.addf %70, %69 : vector<2x32xf32>
    %72 = arith.divf %70, %71 : vector<2x32xf32>
    %73 = arith.mulf %64, %41 : vector<2x32xf32>
    %74 = arith.mulf %58, %66 : vector<2x32xf32>
    %75 = arith.addf %73, %74 : vector<2x32xf32>
    %76 = math.tanh %75 : vector<2x32xf32>
    %77 = arith.mulf %72, %76 : vector<2x32xf32>
    %c0_28 = arith.constant 0 : index
    %78 = arith.index_cast %48 : i32 to index
    %c0_29 = arith.constant 0 : index
    %79 = vector.load %arg5[%c0_28, %78, %c0_29] : memref<1x16x32xf32, #tpu.memory_space<vmem>>, vector<1x2x32xf32>
    %80 = vector.shape_cast %79 : vector<1x2x32xf32> to vector<2x32xf32>
    %81 = vector.shape_cast %77 : vector<2x32xf32> to vector<1x2x32xf32>
    tpu.vector_store %arg5[%c0_28, %78, %c0_29], %81 {strides = array<i32>} : memref<1x16x32xf32, #tpu.memory_space<vmem>>, vector<1x2x32xf32>,
    %c2_i32_30 = arith.constant 2 : i32
    %c2_i32_31 = arith.constant 2 : i32
    %82 = arith.muli %c2_i32_30, %c2_i32_31 : i32
    %83 = arith.index_cast %82 : i32 to index
    %c0_32 = arith.constant 0 : index
    %84 = vector.load %arg6[%83, %c0_32] : memref<16x128xf32, #tpu.memory_space<vmem>>, vector<2x128xf32>
    %cst_33 = arith.constant dense<0.000000e+00> : vector<2x128xf32>
    %85 = tpu.matmul %77, %11, %cst_33 {dimension_numbers = #tpu.dot_dimension_numbers<[1], [0], [0], [1], [0, 0, 1, 1], [], []>} : vector<2x32xf32>, vector<32x128xf32>, vector<2x128xf32> -> vector<2x128xf32>
    %86 = arith.addf %84, %85 : vector<2x128xf32>
    %87 = vector.extract_strided_slice %86 {offsets = [0, 0], sizes = [2, 32], strides = [1, 1]} : vector<2x128xf32> to vector<2x32xf32>
    %88 = arith.negf %87 : vector<2x32xf32>
    %89 = math.exp %88 : vector<2x32xf32>
    %cst_34 = arith.constant 1.000000e+00 : f32
    %90 = vector.broadcast %cst_34 : f32 to vector<2x32xf32>
    %91 = arith.addf %90, %89 : vector<2x32xf32>
    %92 = arith.divf %90, %91 : vector<2x32xf32>
    %93 = vector.extract_strided_slice %86 {offsets = [0, 32], sizes = [2, 32], strides = [1, 1]} : vector<2x128xf32> to vector<2x32xf32>
    %94 = arith.negf %93 : vector<2x32xf32>
    %95 = math.exp %94 : vector<2x32xf32>
    %cst_35 = arith.constant 1.000000e+00 : f32
    %96 = vector.broadcast %cst_35 : f32 to vector<2x32xf32>
    %97 = arith.addf %96, %95 : vector<2x32xf32>
    %98 = arith.divf %96, %97 : vector<2x32xf32>
    %99 = vector.extract_strided_slice %86 {offsets = [0, 64], sizes = [2, 32], strides = [1, 1]} : vector<2x128xf32> to vector<2x32xf32>
    %100 = math.tanh %99 : vector<2x32xf32>
    %101 = vector.extract_strided_slice %86 {offsets = [0, 96], sizes = [2, 32], strides = [1, 1]} : vector<2x128xf32> to vector<2x32xf32>
    %102 = arith.negf %101 : vector<2x32xf32>
    %103 = math.exp %102 : vector<2x32xf32>
    %cst_36 = arith.constant 1.000000e+00 : f32
    %104 = vector.broadcast %cst_36 : f32 to vector<2x32xf32>
    %105 = arith.addf %104, %103 : vector<2x32xf32>
    %106 = arith.divf %104, %105 : vector<2x32xf32>
    %107 = arith.mulf %98, %75 : vector<2x32xf32>
    %108 = arith.mulf %92, %100 : vector<2x32xf32>
    %109 = arith.addf %107, %108 : vector<2x32xf32>
    %110 = math.tanh %109 : vector<2x32xf32>
    %111 = arith.mulf %106, %110 : vector<2x32xf32>
    %c0_37 = arith.constant 0 : index
    %112 = arith.index_cast %82 : i32 to index
    %c0_38 = arith.constant 0 : index
    %113 = vector.load %arg5[%c0_37, %112, %c0_38] : memref<1x16x32xf32, #tpu.memory_space<vmem>>, vector<1x2x32xf32>
    %114 = vector.shape_cast %113 : vector<1x2x32xf32> to vector<2x32xf32>
    %115 = vector.shape_cast %111 : vector<2x32xf32> to vector<1x2x32xf32>
    tpu.vector_store %arg5[%c0_37, %112, %c0_38], %115 {strides = array<i32>} : memref<1x16x32xf32, #tpu.memory_space<vmem>>, vector<1x2x32xf32>,
    %c3_i32 = arith.constant 3 : i32
    %c2_i32_39 = arith.constant 2 : i32
    %116 = arith.muli %c3_i32, %c2_i32_39 : i32
    %117 = arith.index_cast %116 : i32 to index
    %c0_40 = arith.constant 0 : index
    %118 = vector.load %arg6[%117, %c0_40] : memref<16x128xf32, #tpu.memory_space<vmem>>, vector<2x128xf32>
    %cst_41 = arith.constant dense<0.000000e+00> : vector<2x128xf32>
    %119 = tpu.matmul %111, %11, %cst_41 {dimension_numbers = #tpu.dot_dimension_numbers<[1], [0], [0], [1], [0, 0, 1, 1], [], []>} : vector<2x32xf32>, vector<32x128xf32>, vector<2x128xf32> -> vector<2x128xf32>
    %120 = arith.addf %118, %119 : vector<2x128xf32>
    %121 = vector.extract_strided_slice %120 {offsets = [0, 0], sizes = [2, 32], strides = [1, 1]} : vector<2x128xf32> to vector<2x32xf32>
    %122 = arith.negf %121 : vector<2x32xf32>
    %123 = math.exp %122 : vector<2x32xf32>
    %cst_42 = arith.constant 1.000000e+00 : f32
    %124 = vector.broadcast %cst_42 : f32 to vector<2x32xf32>
    %125 = arith.addf %124, %123 : vector<2x32xf32>
    %126 = arith.divf %124, %125 : vector<2x32xf32>
    %127 = vector.extract_strided_slice %120 {offsets = [0, 32], sizes = [2, 32], strides = [1, 1]} : vector<2x128xf32> to vector<2x32xf32>
    %128 = arith.negf %127 : vector<2x32xf32>
    %129 = math.exp %128 : vector<2x32xf32>
    %cst_43 = arith.constant 1.000000e+00 : f32
    %130 = vector.broadcast %cst_43 : f32 to vector<2x32xf32>
    %131 = arith.addf %130, %129 : vector<2x32xf32>
    %132 = arith.divf %130, %131 : vector<2x32xf32>
    %133 = vector.extract_strided_slice %120 {offsets = [0, 64], sizes = [2, 32], strides = [1, 1]} : vector<2x128xf32> to vector<2x32xf32>
    %134 = math.tanh %133 : vector<2x32xf32>
    %135 = vector.extract_strided_slice %120 {offsets = [0, 96], sizes = [2, 32], strides = [1, 1]} : vector<2x128xf32> to vector<2x32xf32>
    %136 = arith.negf %135 : vector<2x32xf32>
    %137 = math.exp %136 : vector<2x32xf32>
    %cst_44 = arith.constant 1.000000e+00 : f32
    %138 = vector.broadcast %cst_44 : f32 to vector<2x32xf32>
    %139 = arith.addf %138, %137 : vector<2x32xf32>
    %140 = arith.divf %138, %139 : vector<2x32xf32>
    %141 = arith.mulf %132, %109 : vector<2x32xf32>
    %142 = arith.mulf %126, %134 : vector<2x32xf32>
    %143 = arith.addf %141, %142 : vector<2x32xf32>
    %144 = math.tanh %143 : vector<2x32xf32>
    %145 = arith.mulf %140, %144 : vector<2x32xf32>
    %c0_45 = arith.constant 0 : index
    %146 = arith.index_cast %116 : i32 to index
    %c0_46 = arith.constant 0 : index
    %147 = vector.load %arg5[%c0_45, %146, %c0_46] : memref<1x16x32xf32, #tpu.memory_space<vmem>>, vector<1x2x32xf32>
    %148 = vector.shape_cast %147 : vector<1x2x32xf32> to vector<2x32xf32>
    %149 = vector.shape_cast %145 : vector<2x32xf32> to vector<1x2x32xf32>
    tpu.vector_store %arg5[%c0_45, %146, %c0_46], %149 {strides = array<i32>} : memref<1x16x32xf32, #tpu.memory_space<vmem>>, vector<1x2x32xf32>,
    %c4_i32 = arith.constant 4 : i32
    %c2_i32_47 = arith.constant 2 : i32
    %150 = arith.muli %c4_i32, %c2_i32_47 : i32
    %151 = arith.index_cast %150 : i32 to index
    %c0_48 = arith.constant 0 : index
    %152 = vector.load %arg6[%151, %c0_48] : memref<16x128xf32, #tpu.memory_space<vmem>>, vector<2x128xf32>
    %cst_49 = arith.constant dense<0.000000e+00> : vector<2x128xf32>
    %153 = tpu.matmul %145, %11, %cst_49 {dimension_numbers = #tpu.dot_dimension_numbers<[1], [0], [0], [1], [0, 0, 1, 1], [], []>} : vector<2x32xf32>, vector<32x128xf32>, vector<2x128xf32> -> vector<2x128xf32>
    %154 = arith.addf %152, %153 : vector<2x128xf32>
    %155 = vector.extract_strided_slice %154 {offsets = [0, 0], sizes = [2, 32], strides = [1, 1]} : vector<2x128xf32> to vector<2x32xf32>
    %156 = arith.negf %155 : vector<2x32xf32>
    %157 = math.exp %156 : vector<2x32xf32>
    %cst_50 = arith.constant 1.000000e+00 : f32
    %158 = vector.broadcast %cst_50 : f32 to vector<2x32xf32>
    %159 = arith.addf %158, %157 : vector<2x32xf32>
    %160 = arith.divf %158, %159 : vector<2x32xf32>
    %161 = vector.extract_strided_slice %154 {offsets = [0, 32], sizes = [2, 32], strides = [1, 1]} : vector<2x128xf32> to vector<2x32xf32>
    %162 = arith.negf %161 : vector<2x32xf32>
    %163 = math.exp %162 : vector<2x32xf32>
    %cst_51 = arith.constant 1.000000e+00 : f32
    %164 = vector.broadcast %cst_51 : f32 to vector<2x32xf32>
    %165 = arith.addf %164, %163 : vector<2x32xf32>
    %166 = arith.divf %164, %165 : vector<2x32xf32>
    %167 = vector.extract_strided_slice %154 {offsets = [0, 64], sizes = [2, 32], strides = [1, 1]} : vector<2x128xf32> to vector<2x32xf32>
    %168 = math.tanh %167 : vector<2x32xf32>
    %169 = vector.extract_strided_slice %154 {offsets = [0, 96], sizes = [2, 32], strides = [1, 1]} : vector<2x128xf32> to vector<2x32xf32>
    %170 = arith.negf %169 : vector<2x32xf32>
    %171 = math.exp %170 : vector<2x32xf32>
    %cst_52 = arith.constant 1.000000e+00 : f32
    %172 = vector.broadcast %cst_52 : f32 to vector<2x32xf32>
    %173 = arith.addf %172, %171 : vector<2x32xf32>
    %174 = arith.divf %172, %173 : vector<2x32xf32>
    %175 = arith.mulf %166, %143 : vector<2x32xf32>
    %176 = arith.mulf %160, %168 : vector<2x32xf32>
    %177 = arith.addf %175, %176 : vector<2x32xf32>
    %178 = math.tanh %177 : vector<2x32xf32>
    %179 = arith.mulf %174, %178 : vector<2x32xf32>
    %c0_53 = arith.constant 0 : index
    %180 = arith.index_cast %150 : i32 to index
    %c0_54 = arith.constant 0 : index
    %181 = vector.load %arg5[%c0_53, %180, %c0_54] : memref<1x16x32xf32, #tpu.memory_space<vmem>>, vector<1x2x32xf32>
    %182 = vector.shape_cast %181 : vector<1x2x32xf32> to vector<2x32xf32>
    %183 = vector.shape_cast %179 : vector<2x32xf32> to vector<1x2x32xf32>
    tpu.vector_store %arg5[%c0_53, %180, %c0_54], %183 {strides = array<i32>} : memref<1x16x32xf32, #tpu.memory_space<vmem>>, vector<1x2x32xf32>,
    %c5_i32 = arith.constant 5 : i32
    %c2_i32_55 = arith.constant 2 : i32
    %184 = arith.muli %c5_i32, %c2_i32_55 : i32
    %185 = arith.index_cast %184 : i32 to index
    %c0_56 = arith.constant 0 : index
    %186 = vector.load %arg6[%185, %c0_56] : memref<16x128xf32, #tpu.memory_space<vmem>>, vector<2x128xf32>
    %cst_57 = arith.constant dense<0.000000e+00> : vector<2x128xf32>
    %187 = tpu.matmul %179, %11, %cst_57 {dimension_numbers = #tpu.dot_dimension_numbers<[1], [0], [0], [1], [0, 0, 1, 1], [], []>} : vector<2x32xf32>, vector<32x128xf32>, vector<2x128xf32> -> vector<2x128xf32>
    %188 = arith.addf %186, %187 : vector<2x128xf32>
    %189 = vector.extract_strided_slice %188 {offsets = [0, 0], sizes = [2, 32], strides = [1, 1]} : vector<2x128xf32> to vector<2x32xf32>
    %190 = arith.negf %189 : vector<2x32xf32>
    %191 = math.exp %190 : vector<2x32xf32>
    %cst_58 = arith.constant 1.000000e+00 : f32
    %192 = vector.broadcast %cst_58 : f32 to vector<2x32xf32>
    %193 = arith.addf %192, %191 : vector<2x32xf32>
    %194 = arith.divf %192, %193 : vector<2x32xf32>
    %195 = vector.extract_strided_slice %188 {offsets = [0, 32], sizes = [2, 32], strides = [1, 1]} : vector<2x128xf32> to vector<2x32xf32>
    %196 = arith.negf %195 : vector<2x32xf32>
    %197 = math.exp %196 : vector<2x32xf32>
    %cst_59 = arith.constant 1.000000e+00 : f32
    %198 = vector.broadcast %cst_59 : f32 to vector<2x32xf32>
    %199 = arith.addf %198, %197 : vector<2x32xf32>
    %200 = arith.divf %198, %199 : vector<2x32xf32>
    %201 = vector.extract_strided_slice %188 {offsets = [0, 64], sizes = [2, 32], strides = [1, 1]} : vector<2x128xf32> to vector<2x32xf32>
    %202 = math.tanh %201 : vector<2x32xf32>
    %203 = vector.extract_strided_slice %188 {offsets = [0, 96], sizes = [2, 32], strides = [1, 1]} : vector<2x128xf32> to vector<2x32xf32>
    %204 = arith.negf %203 : vector<2x32xf32>
    %205 = math.exp %204 : vector<2x32xf32>
    %cst_60 = arith.constant 1.000000e+00 : f32
    %206 = vector.broadcast %cst_60 : f32 to vector<2x32xf32>
    %207 = arith.addf %206, %205 : vector<2x32xf32>
    %208 = arith.divf %206, %207 : vector<2x32xf32>
    %209 = arith.mulf %200, %177 : vector<2x32xf32>
    %210 = arith.mulf %194, %202 : vector<2x32xf32>
    %211 = arith.addf %209, %210 : vector<2x32xf32>
    %212 = math.tanh %211 : vector<2x32xf32>
    %213 = arith.mulf %208, %212 : vector<2x32xf32>
    %c0_61 = arith.constant 0 : index
    %214 = arith.index_cast %184 : i32 to index
    %c0_62 = arith.constant 0 : index
    %215 = vector.load %arg5[%c0_61, %214, %c0_62] : memref<1x16x32xf32, #tpu.memory_space<vmem>>, vector<1x2x32xf32>
    %216 = vector.shape_cast %215 : vector<1x2x32xf32> to vector<2x32xf32>
    %217 = vector.shape_cast %213 : vector<2x32xf32> to vector<1x2x32xf32>
    tpu.vector_store %arg5[%c0_61, %214, %c0_62], %217 {strides = array<i32>} : memref<1x16x32xf32, #tpu.memory_space<vmem>>, vector<1x2x32xf32>,
    %c6_i32 = arith.constant 6 : i32
    %c2_i32_63 = arith.constant 2 : i32
    %218 = arith.muli %c6_i32, %c2_i32_63 : i32
    %219 = arith.index_cast %218 : i32 to index
    %c0_64 = arith.constant 0 : index
    %220 = vector.load %arg6[%219, %c0_64] : memref<16x128xf32, #tpu.memory_space<vmem>>, vector<2x128xf32>
    %cst_65 = arith.constant dense<0.000000e+00> : vector<2x128xf32>
    %221 = tpu.matmul %213, %11, %cst_65 {dimension_numbers = #tpu.dot_dimension_numbers<[1], [0], [0], [1], [0, 0, 1, 1], [], []>} : vector<2x32xf32>, vector<32x128xf32>, vector<2x128xf32> -> vector<2x128xf32>
    %222 = arith.addf %220, %221 : vector<2x128xf32>
    %223 = vector.extract_strided_slice %222 {offsets = [0, 0], sizes = [2, 32], strides = [1, 1]} : vector<2x128xf32> to vector<2x32xf32>
    %224 = arith.negf %223 : vector<2x32xf32>
    %225 = math.exp %224 : vector<2x32xf32>
    %cst_66 = arith.constant 1.000000e+00 : f32
    %226 = vector.broadcast %cst_66 : f32 to vector<2x32xf32>
    %227 = arith.addf %226, %225 : vector<2x32xf32>
    %228 = arith.divf %226, %227 : vector<2x32xf32>
    %229 = vector.extract_strided_slice %222 {offsets = [0, 32], sizes = [2, 32], strides = [1, 1]} : vector<2x128xf32> to vector<2x32xf32>
    %230 = arith.negf %229 : vector<2x32xf32>
    %231 = math.exp %230 : vector<2x32xf32>
    %cst_67 = arith.constant 1.000000e+00 : f32
    %232 = vector.broadcast %cst_67 : f32 to vector<2x32xf32>
    %233 = arith.addf %232, %231 : vector<2x32xf32>
    %234 = arith.divf %232, %233 : vector<2x32xf32>
    %235 = vector.extract_strided_slice %222 {offsets = [0, 64], sizes = [2, 32], strides = [1, 1]} : vector<2x128xf32> to vector<2x32xf32>
    %236 = math.tanh %235 : vector<2x32xf32>
    %237 = vector.extract_strided_slice %222 {offsets = [0, 96], sizes = [2, 32], strides = [1, 1]} : vector<2x128xf32> to vector<2x32xf32>
    %238 = arith.negf %237 : vector<2x32xf32>
    %239 = math.exp %238 : vector<2x32xf32>
    %cst_68 = arith.constant 1.000000e+00 : f32
    %240 = vector.broadcast %cst_68 : f32 to vector<2x32xf32>
    %241 = arith.addf %240, %239 : vector<2x32xf32>
    %242 = arith.divf %240, %241 : vector<2x32xf32>
    %243 = arith.mulf %234, %211 : vector<2x32xf32>
    %244 = arith.mulf %228, %236 : vector<2x32xf32>
    %245 = arith.addf %243, %244 : vector<2x32xf32>
    %246 = math.tanh %245 : vector<2x32xf32>
    %247 = arith.mulf %242, %246 : vector<2x32xf32>
    %c0_69 = arith.constant 0 : index
    %248 = arith.index_cast %218 : i32 to index
    %c0_70 = arith.constant 0 : index
    %249 = vector.load %arg5[%c0_69, %248, %c0_70] : memref<1x16x32xf32, #tpu.memory_space<vmem>>, vector<1x2x32xf32>
    %250 = vector.shape_cast %249 : vector<1x2x32xf32> to vector<2x32xf32>
    %251 = vector.shape_cast %247 : vector<2x32xf32> to vector<1x2x32xf32>
    tpu.vector_store %arg5[%c0_69, %248, %c0_70], %251 {strides = array<i32>} : memref<1x16x32xf32, #tpu.memory_space<vmem>>, vector<1x2x32xf32>,
    %c7_i32 = arith.constant 7 : i32
    %c2_i32_71 = arith.constant 2 : i32
    %252 = arith.muli %c7_i32, %c2_i32_71 : i32
    %253 = arith.index_cast %252 : i32 to index
    %c0_72 = arith.constant 0 : index
    %254 = vector.load %arg6[%253, %c0_72] : memref<16x128xf32, #tpu.memory_space<vmem>>, vector<2x128xf32>
    %cst_73 = arith.constant dense<0.000000e+00> : vector<2x128xf32>
    %255 = tpu.matmul %247, %11, %cst_73 {dimension_numbers = #tpu.dot_dimension_numbers<[1], [0], [0], [1], [0, 0, 1, 1], [], []>} : vector<2x32xf32>, vector<32x128xf32>, vector<2x128xf32> -> vector<2x128xf32>
    %256 = arith.addf %254, %255 : vector<2x128xf32>
    %257 = vector.extract_strided_slice %256 {offsets = [0, 0], sizes = [2, 32], strides = [1, 1]} : vector<2x128xf32> to vector<2x32xf32>
    %258 = arith.negf %257 : vector<2x32xf32>
    %259 = math.exp %258 : vector<2x32xf32>
    %cst_74 = arith.constant 1.000000e+00 : f32
    %260 = vector.broadcast %cst_74 : f32 to vector<2x32xf32>
    %261 = arith.addf %260, %259 : vector<2x32xf32>
    %262 = arith.divf %260, %261 : vector<2x32xf32>
    %263 = vector.extract_strided_slice %256 {offsets = [0, 32], sizes = [2, 32], strides = [1, 1]} : vector<2x128xf32> to vector<2x32xf32>
    %264 = arith.negf %263 : vector<2x32xf32>
    %265 = math.exp %264 : vector<2x32xf32>
    %cst_75 = arith.constant 1.000000e+00 : f32
    %266 = vector.broadcast %cst_75 : f32 to vector<2x32xf32>
    %267 = arith.addf %266, %265 : vector<2x32xf32>
    %268 = arith.divf %266, %267 : vector<2x32xf32>
    %269 = vector.extract_strided_slice %256 {offsets = [0, 64], sizes = [2, 32], strides = [1, 1]} : vector<2x128xf32> to vector<2x32xf32>
    %270 = math.tanh %269 : vector<2x32xf32>
    %271 = vector.extract_strided_slice %256 {offsets = [0, 96], sizes = [2, 32], strides = [1, 1]} : vector<2x128xf32> to vector<2x32xf32>
    %272 = arith.negf %271 : vector<2x32xf32>
    %273 = math.exp %272 : vector<2x32xf32>
    %cst_76 = arith.constant 1.000000e+00 : f32
    %274 = vector.broadcast %cst_76 : f32 to vector<2x32xf32>
    %275 = arith.addf %274, %273 : vector<2x32xf32>
    %276 = arith.divf %274, %275 : vector<2x32xf32>
    %277 = arith.mulf %268, %245 : vector<2x32xf32>
    %278 = arith.mulf %262, %270 : vector<2x32xf32>
    %279 = arith.addf %277, %278 : vector<2x32xf32>
    %280 = math.tanh %279 : vector<2x32xf32>
    %281 = arith.mulf %276, %280 : vector<2x32xf32>
    %c0_77 = arith.constant 0 : index
    %282 = arith.index_cast %252 : i32 to index
    %c0_78 = arith.constant 0 : index
    %283 = vector.load %arg5[%c0_77, %282, %c0_78] : memref<1x16x32xf32, #tpu.memory_space<vmem>>, vector<1x2x32xf32>
    %284 = vector.shape_cast %283 : vector<1x2x32xf32> to vector<2x32xf32>
    %285 = vector.shape_cast %281 : vector<2x32xf32> to vector<1x2x32xf32>
    tpu.vector_store %arg5[%c0_77, %282, %c0_78], %285 {strides = array<i32>} : memref<1x16x32xf32, #tpu.memory_space<vmem>>, vector<1x2x32xf32>,
    %c8_i32 = arith.constant 8 : i32
    return
  }
  func.func @transform_0(%arg0: i32) -> (i32, i32, i32) {
    %c0_i32 = arith.constant 0 : i32
    %c0_i32_0 = arith.constant 0 : i32
    %c0_i32_1 = arith.constant 0 : i32
    return %arg0, %c0_i32, %c0_i32_0 : i32, i32, i32
  }
  func.func @transform_1(%arg0: i32) -> (i32, i32, i32) {
    %c0_i32 = arith.constant 0 : i32
    %c0_i32_0 = arith.constant 0 : i32
    %c0_i32_1 = arith.constant 0 : i32
    return %arg0, %c0_i32, %c0_i32_0 : i32, i32, i32
  }
  func.func @transform_2(%arg0: i32) -> (i32, i32, i32) {
    %c0_i32 = arith.constant 0 : i32
    %c0_i32_0 = arith.constant 0 : i32
    %c0_i32_1 = arith.constant 0 : i32
    return %arg0, %c0_i32, %c0_i32_0 : i32, i32, i32
  }
  func.func @transform_3(%arg0: i32) -> (i32, i32, i32) {
    %c0_i32 = arith.constant 0 : i32
    %c0_i32_0 = arith.constant 0 : i32
    %c0_i32_1 = arith.constant 0 : i32
    return %arg0, %c0_i32, %c0_i32_0 : i32, i32, i32
  }
  func.func @transform_4(%arg0: i32) -> (i32, i32, i32) {
    %c0_i32 = arith.constant 0 : i32
    %c0_i32_0 = arith.constant 0 : i32
    %c0_i32_1 = arith.constant 0 : i32
    return %arg0, %c0_i32, %c0_i32_0 : i32, i32, i32
  }
}

</mosaic_0001>

<llo_original>
// kernel: g_clstm_forward.2
$region0: #{g_clstm_forward.2}
  #allocation0 [shape = 'u32[]', space=smem, size = 0x4, offset = 0x4, fixed_abs, tag = 'smem constant byte address 0x4 - core index']
  #allocation1 [shape = 'u32[144,128]{1,0:T(1,128)}', space=vmem, size = 0x12000, scoped, tag = 'internal scratch']
  #allocation2 [shape = 'f32[16,128]{1,0:T(8,128)}', space=vmem, size = 0x2000, scoped, tag = 'scratch operand']
  %s0 = inlined_call_operand.vmem [shape: f32[2,16,32], index: 0, kind: input, shape index: {}]
  %s1 = inlined_call_operand.vmem [shape: f32[2,32,128], index: 1, kind: input, shape index: {}]
  %s2 = inlined_call_operand.vmem [shape: f32[2,32,128], index: 2, kind: input, shape index: {}]
  %s3 = inlined_call_operand.vmem [shape: f32[2,1,128], index: 3, kind: input, shape index: {}]
  %s4 = inlined_call_operand.vmem [shape: f32[2,16,32], index: 4, kind: output, shape index: {}]
  %s5 = sld [smem:[#allocation0]]
  $region49: #{g_clstm_forward.2} parent=0
    _
  %s7 = ssub.s32 1, %s5
  %s8 = scalar_select 0, %s7, %s5
  loop: start=0, step=1, limit=4
  $region2: #{g_clstm_forward.2} parent=0 // loop_pre_header
    _
  $region3: #{g_clstm_forward.2} parent=0 // loop_header
    %s10 = sphi 0, %s14
    %p11 = scmp.ge.s32.totalorder %s10, 4
    %s20 = sphi 0, %s22
    %s23 = sphi 0, %s20
    %s24 = sphi 0, %s23
    %s40 = sphi 0, %s24
    %s46 = sphi 0, %s48
    %s49 = sphi 0, %s46
    %s50 = sphi 0, %s49
    %s66 = sphi 0, %s50
    %s72 = sphi 0, %s74
    %s75 = sphi 0, %s72
    %s76 = sphi 0, %s75
    %s92 = sphi 0, %s76
    %s98 = sphi 0, %s100
    %s101 = sphi 0, %s98
    %s102 = sphi 0, %s101
    %s118 = sphi 0, %s102
    %s124 = sphi 0, %s126
    %s127 = sphi 0, %s124
    %s128 = sphi 0, %s127
    %s144 = sphi 0, %s128
  $region4: #{g_clstm_forward.2} parent=0 // loop_header_branch
    %13 = sbr.rel (%p11) target = $region8
  $region5: #{g_clstm_forward.2} parent=0 // loop_body
    %s15 = ssub.s32 %s10, 1
    %s16 = ssub.s32 %s10, 2
    %s17 = sadd.s32 %s10, 1
    %s18 = ssub.s32 %s10, %s17
    %p19 = scmp.eq.s32.totalorder %s18, 0
    %s21 = sadd.s32 %s20, 1
    %s22 = scalar_select %p19, %s20, %s21
    %p25 = pneg %p19
    %p26 = scmp.eq.s32.totalorder %s10, 1
    %p27 = por %p25, %p26
    %p28 = scmp.ne.s32.totalorder %s20, %s23
    %p29 = scmp.eq.s32.totalorder %s10, 0
    %p30 = por %p28, %p29
    %p31 = scmp.ne.s32.totalorder %s20, %s23
    %p32 = scmp.eq.s32.totalorder %s15, 1
    %p33 = por %p31, %p32
    %p34 = scmp.ne.s32.totalorder %s23, %s24
    %p35 = scmp.eq.s32.totalorder %s15, 0
    %p36 = por %p34, %p35
    %p37 = scmp.ne.s32.totalorder %s23, %s24
    %p38 = scmp.eq.s32.totalorder %s16, 1
    %p39 = por %p37, %p38
    %p41 = scmp.ne.s32.totalorder %s24, %s40
    %p42 = scmp.eq.s32.totalorder %s16, 0
    %p43 = por %p41, %p42
    %s44 = ssub.s32 %s10, %s17
    %p45 = scmp.eq.s32.totalorder %s44, 0
    %s47 = sadd.s32 %s46, 1
    %s48 = scalar_select %p45, %s46, %s47
    %p51 = pneg %p45
    %p52 = scmp.eq.s32.totalorder %s10, 1
    %p53 = por %p51, %p52
    %p54 = scmp.ne.s32.totalorder %s46, %s49
    %p55 = scmp.eq.s32.totalorder %s10, 0
    %p56 = por %p54, %p55
    %p57 = scmp.ne.s32.totalorder %s46, %s49
    %p58 = scmp.eq.s32.totalorder %s15, 1
    %p59 = por %p57, %p58
    %p60 = scmp.ne.s32.totalorder %s49, %s50
    %p61 = scmp.eq.s32.totalorder %s15, 0
    %p62 = por %p60, %p61
    %p63 = scmp.ne.s32.totalorder %s49, %s50
    %p64 = scmp.eq.s32.totalorder %s16, 1
    %p65 = por %p63, %p64
    %p67 = scmp.ne.s32.totalorder %s50, %s66
    %p68 = scmp.eq.s32.totalorder %s16, 0
    %p69 = por %p67, %p68
    %s70 = ssub.s32 %s10, %s17
    %p71 = scmp.eq.s32.totalorder %s70, 0
    %s73 = sadd.s32 %s72, 1
    %s74 = scalar_select %p71, %s72, %s73
    %p77 = pneg %p71
    %p78 = scmp.eq.s32.totalorder %s10, 1
    %p79 = por %p77, %p78
    %p80 = scmp.ne.s32.totalorder %s72, %s75
    %p81 = scmp.eq.s32.totalorder %s10, 0
    %p82 = por %p80, %p81
    %p83 = scmp.ne.s32.totalorder %s72, %s75
    %p84 = scmp.eq.s32.totalorder %s15, 1
    %p85 = por %p83, %p84
    %p86 = scmp.ne.s32.totalorder %s75, %s76
    %p87 = scmp.eq.s32.totalorder %s15, 0
    %p88 = por %p86, %p87
    %p89 = scmp.ne.s32.totalorder %s75, %s76
    %p90 = scmp.eq.s32.totalorder %s16, 1
    %p91 = por %p89, %p90
    %p93 = scmp.ne.s32.totalorder %s76, %s92
    %p94 = scmp.eq.s32.totalorder %s16, 0
    %p95 = por %p93, %p94
    %s96 = ssub.s32 %s10, %s17
    %p97 = scmp.eq.s32.totalorder %s96, 0
    %s99 = sadd.s32 %s98, 1
    %s100 = scalar_select %p97, %s98, %s99
    %p103 = pneg %p97
    %p104 = scmp.eq.s32.totalorder %s10, 1
    %p105 = por %p103, %p104
    %p106 = scmp.ne.s32.totalorder %s98, %s101
    %p107 = scmp.eq.s32.totalorder %s10, 0
    %p108 = por %p106, %p107
    %p109 = scmp.ne.s32.totalorder %s98, %s101
    %p110 = scmp.eq.s32.totalorder %s15, 1
    %p111 = por %p109, %p110
    %p112 = scmp.ne.s32.totalorder %s101, %s102
    %p113 = scmp.eq.s32.totalorder %s15, 0
    %p114 = por %p112, %p113
    %p115 = scmp.ne.s32.totalorder %s101, %s102
    %p116 = scmp.eq.s32.totalorder %s16, 1
    %p117 = por %p115, %p116
    %p119 = scmp.ne.s32.totalorder %s102, %s118
    %p120 = scmp.eq.s32.totalorder %s16, 0
    %p121 = por %p119, %p120
    %s122 = ssub.s32 %s10, %s17
    %p123 = scmp.eq.s32.totalorder %s122, 0
    %s125 = sadd.s32 %s124, 1
    %s126 = scalar_select %p123, %s124, %s125
    %p129 = pneg %p123
    %p130 = scmp.eq.s32.totalorder %s10, 1
    %p131 = por %p129, %p130
    %p132 = scmp.ne.s32.totalorder %s124, %s127
    %p133 = scmp.eq.s32.totalorder %s10, 0
    %p134 = por %p132, %p133
    %p135 = scmp.ne.s32.totalorder %s124, %s127
    %p136 = scmp.eq.s32.totalorder %s15, 1
    %p137 = por %p135, %p136
    %p138 = scmp.ne.s32.totalorder %s127, %s128
    %p139 = scmp.eq.s32.totalorder %s15, 0
    %p140 = por %p138, %p139
    %p141 = scmp.ne.s32.totalorder %s127, %s128
    %p142 = scmp.eq.s32.totalorder %s16, 1
    %p143 = por %p141, %p142
    %p145 = scmp.ne.s32.totalorder %s128, %s144
    %p146 = scmp.eq.s32.totalorder %s16, 0
    %p147 = por %p145, %p146
    %p148 = scmp.le.s32.totalorder 1, %s10
    %p149 = scmp.lt.s32.totalorder %s10, 3
    %p150 = pnand %p148, %p149
    %p151 = pneg %p150
    // Predicated region
    $region9: #{g_clstm_forward.2} parent=5 // pred_check
      _
    $region10: #{g_clstm_forward.2} parent=5 // pred_check_branch
      %153 = sbr.rel (%p150) target = $region12
    $region11: #{g_clstm_forward.2} parent=5 // pred_region
      %s154 = ssub.s32 %s10, 1
    $region12: #{g_clstm_forward.2} parent=5 // pred_fallthru
      _
    %p155 = scmp.lt.s32.totalorder %s10, 2
    // Predicated region
    $region13: #{g_clstm_forward.2} parent=5 // pred_check
      %p156 = pneg %p155
    $region14: #{g_clstm_forward.2} parent=5 // pred_check_branch
      %158 = sbr.rel (%p156) target = $region16
    $region15: #{g_clstm_forward.2} parent=5 // pred_region
      // Predicated region
      $region17: #{g_clstm_forward.2} parent=15 // pred_check
        %p159 = pneg %p30
      $region18: #{g_clstm_forward.2} parent=15 // pred_check_branch
        %161 = sbr.rel (%p159) target = $region20
      $region19: #{g_clstm_forward.2} parent=15 // pred_region
        %p162 = scmp.lt.s32.totalorder %s10, 1
        %s163 = scalar_select %p162, %s10, 1
        %s164 = smul.addr %s163, 2
        %s165 = smul.addr %s164, 8
        %s166 = scalar_lea.vmem %s0, %s165
      $region20: #{g_clstm_forward.2} parent=15 // pred_fallthru
        _
      // Predicated region
      $region21: #{g_clstm_forward.2} parent=15 // pred_check
        %p167 = pneg %p56
      $region22: #{g_clstm_forward.2} parent=15 // pred_check_branch
        %169 = sbr.rel (%p167) target = $region24
      $region23: #{g_clstm_forward.2} parent=15 // pred_region
        %p170 = scmp.lt.s32.totalorder %s10, 1
        %s171 = scalar_select %p170, %s10, 1
        %s172 = smul.addr %s171, 4
        %s173 = smul.addr %s172, 8
        %s174 = scalar_lea.vmem %s1, %s173
      $region24: #{g_clstm_forward.2} parent=15 // pred_fallthru
        _
      // Predicated region
      $region25: #{g_clstm_forward.2} parent=15 // pred_check
        %p175 = pneg %p82
      $region26: #{g_clstm_forward.2} parent=15 // pred_check_branch
        %177 = sbr.rel (%p175) target = $region28
      $region27: #{g_clstm_forward.2} parent=15 // pred_region
        %p178 = scmp.lt.s32.totalorder %s10, 1
        %s179 = scalar_select %p178, %s10, 1
        %s180 = smul.addr %s179, 4
        %s181 = smul.addr %s180, 8
        %s182 = scalar_lea.vmem %s2, %s181
      $region28: #{g_clstm_forward.2} parent=15 // pred_fallthru
        _
      // Predicated region
      $region29: #{g_clstm_forward.2} parent=15 // pred_check
        %p183 = pneg %p108
      $region30: #{g_clstm_forward.2} parent=15 // pred_check_branch
        %185 = sbr.rel (%p183) target = $region32
      $region31: #{g_clstm_forward.2} parent=15 // pred_region
        %p186 = scmp.lt.s32.totalorder %s10, 1
        %s187 = scalar_select %p186, %s10, 1
        %s188 = scalar_lea.vmem %s3, %s187
      $region32: #{g_clstm_forward.2} parent=15 // pred_fallthru
        _
    $region16: #{g_clstm_forward.2} parent=5 // pred_fallthru
      _
    %p189 = scmp.le.s32.totalorder 1, %s10
    %p190 = scmp.lt.s32.totalorder %s10, 3
    %p191 = pnand %p189, %p190
    %p192 = pneg %p191
    // Predicated region
    $region33: #{g_clstm_forward.2} parent=5 // pred_check
      _
    $region34: #{g_clstm_forward.2} parent=5 // pred_check_branch
      %194 = sbr.rel (%p191) target = $region36
    $region35: #{g_clstm_forward.2} parent=5 // pred_region
      %s195 = ssub.s32 %s10, 1
      %p196 = scmp.lt.s32.totalorder %s15, 1
      %s197 = scalar_select %p196, %s15, 1
      %s198 = smul.addr %s197, 2
      %s199 = smul.addr %s198, 8
      %s200 = scalar_lea.vmem %s0, %s199
      %p201 = pneg %p36
      %p202 = pneg %p33
      %p203 = scmp.lt.s32.totalorder %s15, 1
      %s204 = scalar_select %p203, %s15, 1
      %s205 = smul.addr %s204, 4
      %s206 = smul.addr %s205, 8
      %s207 = scalar_lea.vmem %s1, %s206
      %p208 = pneg %p62
      %p209 = pneg %p59
      %p210 = scmp.lt.s32.totalorder %s15, 1
      %s211 = scalar_select %p210, %s15, 1
      %s212 = smul.addr %s211, 4
      %s213 = smul.addr %s212, 8
      %s214 = scalar_lea.vmem %s2, %s213
      %p215 = pneg %p88
      %p216 = pneg %p85
      %p217 = scmp.lt.s32.totalorder %s15, 1
      %s218 = scalar_select %p217, %s15, 1
      %s219 = scalar_lea.vmem %s3, %s218
      %p220 = pneg %p114
      %p221 = pneg %p111
      %p222 = pneg %p140
      %p223 = pneg %p137
      %p224 = scmp.lt.s32.totalorder %s15, 1
      %s225 = scalar_select %p224, %s15, 1
      %s226 = smul.addr %s225, 2
      %s227 = smul.addr %s226, 8
      %s228 = scalar_lea.vmem %s4, %s227
      %p229 = scmp.lt.s32.totalorder %s15, 1
      %s230 = scalar_select %p229, %s15, 1
      %s231 = smul.addr %s230, 2
      %s232 = smul.addr %s231, 8
      %s233 = scalar_lea.vmem %s0, %s232
      %p234 = scmp.lt.s32.totalorder %s15, 1
      %s235 = scalar_select %p234, %s15, 1
      %s236 = smul.addr %s235, 4
      %s237 = smul.addr %s236, 8
      %s238 = scalar_lea.vmem %s1, %s237
      %p239 = scmp.lt.s32.totalorder %s15, 1
      %s240 = scalar_select %p239, %s15, 1
      %s241 = smul.addr %s240, 4
      %s242 = smul.addr %s241, 8
      %s243 = scalar_lea.vmem %s2, %s242
      %p244 = scmp.lt.s32.totalorder %s15, 1
      %s245 = scalar_select %p244, %s15, 1
      %s246 = scalar_lea.vmem %s3, %s245
      %p247 = scmp.lt.s32.totalorder %s15, 1
      %s248 = scalar_select %p247, %s15, 1
      %s249 = smul.addr %s248, 2
      %s250 = smul.addr %s249, 8
      %s251 = scalar_lea.vmem %s4, %s250
      %v252 = vld [vmem:[%s233] sm:$0xff]
      %v253 = vld [vmem:[%s233 + $0x8] sm:$0xff]
      %v254 = vld [vmem:[%s238] sm:$0xff]
      %v255 = vld [vmem:[%s238 + $0x8] sm:$0xff]
      %v256 = vld [vmem:[%s238 + $0x10] sm:$0xff]
      %v257 = vld [vmem:[%s238 + $0x18] sm:$0xff]
      %v258 = vld [vmem:[%s246] sm:$0x1]
      %v260 = vlaneseq
      %v261 = vshrl.u32 %v260, 7
      %v262 = vsub.s32 0, %v261
      %v263 = vrot.slane %v258, %v262
      %vm265 = vcmask 261120
      %v267 = vsel %vm265, %v252, 0
      %v270 = vsel %vm265, %v253, 0
      %272 = vmatprep.subr.mxu0 0.0
      %273 = vmatpush1.msra.mxu0 %v254
      %274 = vmatprep.subr.mxu0 0.0
      %275 = vmatpush1.msra.mxu0 %v255
      %276 = vmatprep.subr.mxu0 0.0
      %277 = vmatpush1.msra.mxu0 %v256
      %278 = vmatprep.subr.mxu0 0.0
      %279 = vmatpush1.msra.mxu0 %v257
      %280 = vmatprep.subr.mxu0 0.0
      %281 = vmatpush1.msra.mxu0 0.0
      %282 = vmatprep.subr.mxu0 0.0
      %283 = vmatpush1.msra.mxu0 0.0
      %284 = vmatprep.subr.mxu0 0.0
      %285 = vmatpush1.msra.mxu0 0.0
      %286 = vmatprep.subr.mxu0 0.0
      %287 = vmatpush1.msra.mxu0 0.0
      %288 = vmatprep.subr.mxu0 0.0
      %289 = vmatpush1.msra.mxu0 0.0
      %290 = vmatprep.subr.mxu0 0.0
      %291 = vmatpush1.msra.mxu0 0.0
      %292 = vmatprep.subr.mxu0 0.0
      %293 = vmatpush1.msra.mxu0 0.0
      %294 = vmatprep.subr.mxu0 0.0
      %295 = vmatpush1.msra.mxu0 0.0
      %296 = vmatprep.subr.mxu0 0.0
      %297 = vmatpush1.msra.mxu0 0.0
      %298 = vmatprep.subr.mxu0 0.0
      %299 = vmatpush1.msra.mxu0 0.0
      %300 = vmatprep.subr.mxu0 0.0
      %301 = vmatpush1.msra.mxu0 0.0
      %302 = vmatprep.subr.mxu0 0.0
      %303 = vmatpush1.msra.mxu0 0.0
      %304 = vmatprep.subr.mxu0 0.0
      %305 = vmatpush1.msra.mxu0 0.0
      %306 = vmatprep.subr.mxu0 0.0
      %307 = vmatpush1.msra.mxu0 0.0
      %308 = vmatprep.subr.mxu0 0.0
      %309 = vmatpush1.msra.mxu0 0.0
      %310 = vmatprep.subr.mxu0 0.0
      %311 = vmatpush1.msra.mxu0 0.0
      %312 = vmatprep.subr.mxu0 0.0
      %313 = vmatpush1.msra.mxu0 0.0
      %314 = vmatprep.subr.mxu0 0.0
      %315 = vmatpush1.msra.mxu0 0.0
      %316 = vmatprep.subr.mxu0 0.0
      %317 = vmatpush1.msra.mxu0 0.0
      %318 = vmatprep.subr.mxu0 0.0
      %319 = vmatpush1.msra.mxu0 0.0
      %320 = vmatprep.subr.mxu0 0.0
      %321 = vmatpush1.msra.mxu0 0.0
      %322 = vmatprep.subr.mxu0 0.0
      %323 = vmatpush1.msra.mxu0 0.0
      %324 = vmatprep.subr.mxu0 0.0
      %325 = vmatpush1.msra.mxu0 0.0
      %326 = vmatprep.subr.mxu0 0.0
      %327 = vmatpush1.msra.mxu0 0.0
      %328 = vmatprep.subr.mxu0 0.0
      %329 = vmatpush1.msra.mxu0 0.0
      %330 = vmatprep.subr.mxu0 0.0
      %331 = vmatpush1.msra.mxu0 0.0
      %332 = vmatprep.subr.mxu0 0.0
      %333 = vmatpush1.msra.mxu0 0.0
      %334 = vmatprep.subr.mxu0 0.0
      %335 = vmatpush1.msra.mxu0 0.0
      %336 = vmatprep.mubr.f32.mxu0 0.0
      %337 = vmatmul.mubr.f32.gmra.mrb[0].mxu0 %v267
      %v338 = vpop.f32.mrb[0].mxu0
      %v339 = vadd.f32 %v263, %v338
      %v340 = vpop.f32.mrb[0].mxu0
      %341 = vmatprep.mubr.f32.mxu0 0.0
      %342 = vmatmul.mubr.f32.gmra.mrb[0].mxu0 %v270
      %v343 = vpop.f32.mrb[0].mxu0
      %v344 = vadd.f32 %v263, %v343
      %v345 = vpop.f32.mrb[0].mxu0
      %346 = vdwg.mxu0
      %347 = vst [vmem:[#allocation2] sm:$0xff] %v339
      %348 = vst [vmem:[#allocation2 + $0x8] sm:$0xff] %v344
      %v349 = vld [vmem:[%s243] sm:$0xff]
      %v350 = vld [vmem:[%s243 + $0x8] sm:$0xff]
      %v351 = vld [vmem:[%s243 + $0x10] sm:$0xff]
      %v352 = vld [vmem:[%s243 + $0x18] sm:$0xff]
      %v353 = vld [vmem:[#allocation2] sm:$0x3]
      %v355 = vsel %vm265, 0.0, 0
      %357 = vmatprep.subr.mxu0 0.0
      %358 = vmatpush1.msra.mxu0 %v349
      %359 = vmatprep.subr.mxu0 0.0
      %360 = vmatpush1.msra.mxu0 %v350
      %361 = vmatprep.subr.mxu0 0.0
      %362 = vmatpush1.msra.mxu0 %v351
      %363 = vmatprep.subr.mxu0 0.0
      %364 = vmatpush1.msra.mxu0 %v352
      %365 = vmatprep.subr.mxu0 0.0
      %366 = vmatpush1.msra.mxu0 0.0
      %367 = vmatprep.subr.mxu0 0.0
      %368 = vmatpush1.msra.mxu0 0.0
      %369 = vmatprep.subr.mxu0 0.0
      %370 = vmatpush1.msra.mxu0 0.0
      %371 = vmatprep.subr.mxu0 0.0
      %372 = vmatpush1.msra.mxu0 0.0
      %373 = vmatprep.subr.mxu0 0.0
      %374 = vmatpush1.msra.mxu0 0.0
      %375 = vmatprep.subr.mxu0 0.0
      %376 = vmatpush1.msra.mxu0 0.0
      %377 = vmatprep.subr.mxu0 0.0
      %378 = vmatpush1.msra.mxu0 0.0
      %379 = vmatprep.subr.mxu0 0.0
      %380 = vmatpush1.msra.mxu0 0.0
      %381 = vmatprep.subr.mxu0 0.0
      %382 = vmatpush1.msra.mxu0 0.0
      %383 = vmatprep.subr.mxu0 0.0
      %384 = vmatpush1.msra.mxu0 0.0
      %385 = vmatprep.subr.mxu0 0.0
      %386 = vmatpush1.msra.mxu0 0.0
      %387 = vmatprep.subr.mxu0 0.0
      %388 = vmatpush1.msra.mxu0 0.0
      %389 = vmatprep.subr.mxu0 0.0
      %390 = vmatpush1.msra.mxu0 0.0
      %391 = vmatprep.subr.mxu0 0.0
      %392 = vmatpush1.msra.mxu0 0.0
      %393 = vmatprep.subr.mxu0 0.0
      %394 = vmatpush1.msra.mxu0 0.0
      %395 = vmatprep.subr.mxu0 0.0
      %396 = vmatpush1.msra.mxu0 0.0
      %397 = vmatprep.subr.mxu0 0.0
      %398 = vmatpush1.msra.mxu0 0.0
      %399 = vmatprep.subr.mxu0 0.0
      %400 = vmatpush1.msra.mxu0 0.0
      %401 = vmatprep.subr.mxu0 0.0
      %402 = vmatpush1.msra.mxu0 0.0
      %403 = vmatprep.subr.mxu0 0.0
      %404 = vmatpush1.msra.mxu0 0.0
      %405 = vmatprep.subr.mxu0 0.0
      %406 = vmatpush1.msra.mxu0 0.0
      %407 = vmatprep.subr.mxu0 0.0
      %408 = vmatpush1.msra.mxu0 0.0
      %409 = vmatprep.subr.mxu0 0.0
      %410 = vmatpush1.msra.mxu0 0.0
      %411 = vmatprep.subr.mxu0 0.0
      %412 = vmatpush1.msra.mxu0 0.0
      %413 = vmatprep.subr.mxu0 0.0
      %414 = vmatpush1.msra.mxu0 0.0
      %415 = vmatprep.subr.mxu0 0.0
      %416 = vmatpush1.msra.mxu0 0.0
      %417 = vmatprep.subr.mxu0 0.0
      %418 = vmatpush1.msra.mxu0 0.0
      %419 = vmatprep.subr.mxu0 0.0
      %420 = vmatpush1.msra.mxu0 0.0
      %421 = vmatprep.mubr.f32.mxu0 0.0
      %422 = vmatmul.mubr.f32.gmra.mrb[0].mxu0 %v355
      %v423 = vpop.f32.mrb[0].mxu0
      %v424 = vadd.f32 0.0, %v423
      %v425 = vpop.f32.mrb[0].mxu0
      %426 = vdwg.mxu0
      %v427 = vadd.f32 %v353, %v424
      %v428 = vxor.u32 %v427, 2147483648
      %v429 = vmul.f32 %v428, 1.442695
      %v430 = vpow.pop %v429
      %v431 = vadd.f32 %v430, 1.0
      %v432 = vrcp.pop %v431
      %v433 = vmul.f32 1.0, %v432
      %v434 = vtanh.pop %v427
      %v435 = vmul.f32 %v433, 0.0
      %437 = vrot.lane.b32.xlu0 %v434, 64
      %v438 = vpop.permute.xlu0 %437
      %v440 = vmul.f32 %v433, %v438
      %442 = vrot.lane.b32.xlu0 %v440, 32
      %v443 = vpop.permute.xlu0 %442
      %v445 = vadd.f32 %v435, %v443
      %v446 = vtanh.pop %v445
      %448 = vrot.lane.b32.xlu0 %v446, 64
      %v449 = vpop.permute.xlu0 %448
      %v451 = vmul.f32 %v433, %v449
      %453 = vrot.lane.b32.xlu0 %v451, 32
      %v454 = vpop.permute.xlu0 %453
      %vm456 = vcmask 254976
      %457 = vst.msk [vmem:[%s251] sm:$0x3] %vm456, %v454
      %v458 = vld [vmem:[#allocation2 + $0x2] sm:$0x3]
      %v459 = vsel %vm265, %v454, 0
      %461 = vmatprep.subr.mxu0 0.0
      %462 = vmatpush1.msra.mxu0 %v349
      %463 = vmatprep.subr.mxu0 0.0
      %464 = vmatpush1.msra.mxu0 %v350
      %465 = vmatprep.subr.mxu0 0.0
      %466 = vmatpush1.msra.mxu0 %v351
      %467 = vmatprep.subr.mxu0 0.0
      %468 = vmatpush1.msra.mxu0 %v352
      %469 = vmatprep.subr.mxu0 0.0
      %470 = vmatpush1.msra.mxu0 0.0
      %471 = vmatprep.subr.mxu0 0.0
      %472 = vmatpush1.msra.mxu0 0.0
      %473 = vmatprep.subr.mxu0 0.0
      %474 = vmatpush1.msra.mxu0 0.0
      %475 = vmatprep.subr.mxu0 0.0
      %476 = vmatpush1.msra.mxu0 0.0
      %477 = vmatprep.subr.mxu0 0.0
      %478 = vmatpush1.msra.mxu0 0.0
      %479 = vmatprep.subr.mxu0 0.0
      %480 = vmatpush1.msra.mxu0 0.0
      %481 = vmatprep.subr.mxu0 0.0
      %482 = vmatpush1.msra.mxu0 0.0
      %483 = vmatprep.subr.mxu0 0.0
      %484 = vmatpush1.msra.mxu0 0.0
      %485 = vmatprep.subr.mxu0 0.0
      %486 = vmatpush1.msra.mxu0 0.0
      %487 = vmatprep.subr.mxu0 0.0
      %488 = vmatpush1.msra.mxu0 0.0
      %489 = vmatprep.subr.mxu0 0.0
      %490 = vmatpush1.msra.mxu0 0.0
      %491 = vmatprep.subr.mxu0 0.0
      %492 = vmatpush1.msra.mxu0 0.0
      %493 = vmatprep.subr.mxu0 0.0
      %494 = vmatpush1.msra.mxu0 0.0
      %495 = vmatprep.subr.mxu0 0.0
      %496 = vmatpush1.msra.mxu0 0.0
      %497 = vmatprep.subr.mxu0 0.0
      %498 = vmatpush1.msra.mxu0 0.0
      %499 = vmatprep.subr.mxu0 0.0
      %500 = vmatpush1.msra.mxu0 0.0
      %501 = vmatprep.subr.mxu0 0.0
      %502 = vmatpush1.msra.mxu0 0.0
      %503 = vmatprep.subr.mxu0 0.0
      %504 = vmatpush1.msra.mxu0 0.0
      %505 = vmatprep.subr.mxu0 0.0
      %506 = vmatpush1.msra.mxu0 0.0
      %507 = vmatprep.subr.mxu0 0.0
      %508 = vmatpush1.msra.mxu0 0.0
      %509 = vmatprep.subr.mxu0 0.0
      %510 = vmatpush1.msra.mxu0 0.0
      %511 = vmatprep.subr.mxu0 0.0
      %512 = vmatpush1.msra.mxu0 0.0
      %513 = vmatprep.subr.mxu0 0.0
      %514 = vmatpush1.msra.mxu0 0.0
      %515 = vmatprep.subr.mxu0 0.0
      %516 = vmatpush1.msra.mxu0 0.0
      %517 = vmatprep.subr.mxu0 0.0
      %518 = vmatpush1.msra.mxu0 0.0
      %519 = vmatprep.subr.mxu0 0.0
      %520 = vmatpush1.msra.mxu0 0.0
      %521 = vmatprep.subr.mxu0 0.0
      %522 = vmatpush1.msra.mxu0 0.0
      %523 = vmatprep.subr.mxu0 0.0
      %524 = vmatpush1.msra.mxu0 0.0
      %525 = vmatprep.mubr.f32.mxu0 0.0
      %526 = vmatmul.mubr.f32.gmra.mrb[0].mxu0 %v459
      %v527 = vpop.f32.mrb[0].mxu0
      %v528 = vadd.f32 0.0, %v527
      %v529 = vpop.f32.mrb[0].mxu0
      %530 = vdwg.mxu0
      %v531 = vadd.f32 %v458, %v528
      %v532 = vxor.u32 %v531, 2147483648
      %v533 = vmul.f32 %v532, 1.442695
      %v534 = vpow.pop %v533
      %v535 = vadd.f32 %v534, 1.0
      %v536 = vrcp.pop %v535
      %v537 = vmul.f32 1.0, %v536
      %v538 = vtanh.pop %v531
      %v539 = vmul.f32 %v537, %v445
      %541 = vrot.lane.b32.xlu0 %v538, 64
      %v542 = vpop.permute.xlu0 %541
      %v544 = vmul.f32 %v537, %v542
      %546 = vrot.lane.b32.xlu0 %v544, 32
      %v547 = vpop.permute.xlu0 %546
      %v549 = vadd.f32 %v539, %v547
      %v550 = vtanh.pop %v549
      %552 = vrot.lane.b32.xlu0 %v550, 64
      %v553 = vpop.permute.xlu0 %552
      %v555 = vmul.f32 %v537, %v553
      %557 = vrot.lane.b32.xlu0 %v555, 32
      %v558 = vpop.permute.xlu0 %557
      %560 = vst.msk [vmem:[%s251 + $0x2] sm:$0x3] %vm456, %v558
      %v561 = vld [vmem:[#allocation2 + $0x4] sm:$0x3]
      %v562 = vsel %vm265, %v558, 0
      %564 = vmatprep.subr.mxu0 0.0
      %565 = vmatpush1.msra.mxu0 %v349
      %566 = vmatprep.subr.mxu0 0.0
      %567 = vmatpush1.msra.mxu0 %v350
      %568 = vmatprep.subr.mxu0 0.0
      %569 = vmatpush1.msra.mxu0 %v351
      %570 = vmatprep.subr.mxu0 0.0
      %571 = vmatpush1.msra.mxu0 %v352
      %572 = vmatprep.subr.mxu0 0.0
      %573 = vmatpush1.msra.mxu0 0.0
      %574 = vmatprep.subr.mxu0 0.0
      %575 = vmatpush1.msra.mxu0 0.0
      %576 = vmatprep.subr.mxu0 0.0
      %577 = vmatpush1.msra.mxu0 0.0
      %578 = vmatprep.subr.mxu0 0.0
      %579 = vmatpush1.msra.mxu0 0.0
      %580 = vmatprep.subr.mxu0 0.0
      %581 = vmatpush1.msra.mxu0 0.0
      %582 = vmatprep.subr.mxu0 0.0
      %583 = vmatpush1.msra.mxu0 0.0
      %584 = vmatprep.subr.mxu0 0.0
      %585 = vmatpush1.msra.mxu0 0.0
      %586 = vmatprep.subr.mxu0 0.0
      %587 = vmatpush1.msra.mxu0 0.0
      %588 = vmatprep.subr.mxu0 0.0
      %589 = vmatpush1.msra.mxu0 0.0
      %590 = vmatprep.subr.mxu0 0.0
      %591 = vmatpush1.msra.mxu0 0.0
      %592 = vmatprep.subr.mxu0 0.0
      %593 = vmatpush1.msra.mxu0 0.0
      %594 = vmatprep.subr.mxu0 0.0
      %595 = vmatpush1.msra.mxu0 0.0
      %596 = vmatprep.subr.mxu0 0.0
      %597 = vmatpush1.msra.mxu0 0.0
      %598 = vmatprep.subr.mxu0 0.0
      %599 = vmatpush1.msra.mxu0 0.0
      %600 = vmatprep.subr.mxu0 0.0
      %601 = vmatpush1.msra.mxu0 0.0
      %602 = vmatprep.subr.mxu0 0.0
      %603 = vmatpush1.msra.mxu0 0.0
      %604 = vmatprep.subr.mxu0 0.0
      %605 = vmatpush1.msra.mxu0 0.0
      %606 = vmatprep.subr.mxu0 0.0
      %607 = vmatpush1.msra.mxu0 0.0
      %608 = vmatprep.subr.mxu0 0.0
      %609 = vmatpush1.msra.mxu0 0.0
      %610 = vmatprep.subr.mxu0 0.0
      %611 = vmatpush1.msra.mxu0 0.0
      %612 = vmatprep.subr.mxu0 0.0
      %613 = vmatpush1.msra.mxu0 0.0
      %614 = vmatprep.subr.mxu0 0.0
      %615 = vmatpush1.msra.mxu0 0.0
      %616 = vmatprep.subr.mxu0 0.0
      %617 = vmatpush1.msra.mxu0 0.0
      %618 = vmatprep.subr.mxu0 0.0
      %619 = vmatpush1.msra.mxu0 0.0
      %620 = vmatprep.subr.mxu0 0.0
      %621 = vmatpush1.msra.mxu0 0.0
      %622 = vmatprep.subr.mxu0 0.0
      %623 = vmatpush1.msra.mxu0 0.0
      %624 = vmatprep.subr.mxu0 0.0
      %625 = vmatpush1.msra.mxu0 0.0
      %626 = vmatprep.subr.mxu0 0.0
      %627 = vmatpush1.msra.mxu0 0.0
      %628 = vmatprep.mubr.f32.mxu0 0.0
      %629 = vmatmul.mubr.f32.gmra.mrb[0].mxu0 %v562
      %v630 = vpop.f32.mrb[0].mxu0
      %v631 = vadd.f32 0.0, %v630
      %v632 = vpop.f32.mrb[0].mxu0
      %633 = vdwg.mxu0
      %v634 = vadd.f32 %v561, %v631
      %v635 = vxor.u32 %v634, 2147483648
      %v636 = vmul.f32 %v635, 1.442695
      %v637 = vpow.pop %v636
      %v638 = vadd.f32 %v637, 1.0
      %v639 = vrcp.pop %v638
      %v640 = vmul.f32 1.0, %v639
      %v641 = vtanh.pop %v634
      %v642 = vmul.f32 %v640, %v549
      %644 = vrot.lane.b32.xlu0 %v641, 64
      %v645 = vpop.permute.xlu0 %644
      %v647 = vmul.f32 %v640, %v645
      %649 = vrot.lane.b32.xlu0 %v647, 32
      %v650 = vpop.permute.xlu0 %649
      %v652 = vadd.f32 %v642, %v650
      %v653 = vtanh.pop %v652
      %655 = vrot.lane.b32.xlu0 %v653, 64
      %v656 = vpop.permute.xlu0 %655
      %v658 = vmul.f32 %v640, %v656
      %660 = vrot.lane.b32.xlu0 %v658, 32
      %v661 = vpop.permute.xlu0 %660
      %663 = vst.msk [vmem:[%s251 + $0x4] sm:$0x3] %vm456, %v661
      %v664 = vld [vmem:[#allocation2 + $0x6] sm:$0x3]
      %v665 = vsel %vm265, %v661, 0
      %667 = vmatprep.subr.mxu0 0.0
      %668 = vmatpush1.msra.mxu0 %v349
      %669 = vmatprep.subr.mxu0 0.0
      %670 = vmatpush1.msra.mxu0 %v350
      %671 = vmatprep.subr.mxu0 0.0
      %672 = vmatpush1.msra.mxu0 %v351
      %673 = vmatprep.subr.mxu0 0.0
      %674 = vmatpush1.msra.mxu0 %v352
      %675 = vmatprep.subr.mxu0 0.0
      %676 = vmatpush1.msra.mxu0 0.0
      %677 = vmatprep.subr.mxu0 0.0
      %678 = vmatpush1.msra.mxu0 0.0
      %679 = vmatprep.subr.mxu0 0.0
      %680 = vmatpush1.msra.mxu0 0.0
      %681 = vmatprep.subr.mxu0 0.0
      %682 = vmatpush1.msra.mxu0 0.0
      %683 = vmatprep.subr.mxu0 0.0
      %684 = vmatpush1.msra.mxu0 0.0
      %685 = vmatprep.subr.mxu0 0.0
      %686 = vmatpush1.msra.mxu0 0.0
      %687 = vmatprep.subr.mxu0 0.0
      %688 = vmatpush1.msra.mxu0 0.0
      %689 = vmatprep.subr.mxu0 0.0
      %690 = vmatpush1.msra.mxu0 0.0
      %691 = vmatprep.subr.mxu0 0.0
      %692 = vmatpush1.msra.mxu0 0.0
      %693 = vmatprep.subr.mxu0 0.0
      %694 = vmatpush1.msra.mxu0 0.0
      %695 = vmatprep.subr.mxu0 0.0
      %696 = vmatpush1.msra.mxu0 0.0
      %697 = vmatprep.subr.mxu0 0.0
      %698 = vmatpush1.msra.mxu0 0.0
      %699 = vmatprep.subr.mxu0 0.0
      %700 = vmatpush1.msra.mxu0 0.0
      %701 = vmatprep.subr.mxu0 0.0
      %702 = vmatpush1.msra.mxu0 0.0
      %703 = vmatprep.subr.mxu0 0.0
      %704 = vmatpush1.msra.mxu0 0.0
      %705 = vmatprep.subr.mxu0 0.0
      %706 = vmatpush1.msra.mxu0 0.0
      %707 = vmatprep.subr.mxu0 0.0
      %708 = vmatpush1.msra.mxu0 0.0
      %709 = vmatprep.subr.mxu0 0.0
      %710 = vmatpush1.msra.mxu0 0.0
      %711 = vmatprep.subr.mxu0 0.0
      %712 = vmatpush1.msra.mxu0 0.0
      %713 = vmatprep.subr.mxu0 0.0
      %714 = vmatpush1.msra.mxu0 0.0
      %715 = vmatprep.subr.mxu0 0.0
      %716 = vmatpush1.msra.mxu0 0.0
      %717 = vmatprep.subr.mxu0 0.0
      %718 = vmatpush1.msra.mxu0 0.0
      %719 = vmatprep.subr.mxu0 0.0
      %720 = vmatpush1.msra.mxu0 0.0
      %721 = vmatprep.subr.mxu0 0.0
      %722 = vmatpush1.msra.mxu0 0.0
      %723 = vmatprep.subr.mxu0 0.0
      %724 = vmatpush1.msra.mxu0 0.0
      %725 = vmatprep.subr.mxu0 0.0
      %726 = vmatpush1.msra.mxu0 0.0
      %727 = vmatprep.subr.mxu0 0.0
      %728 = vmatpush1.msra.mxu0 0.0
      %729 = vmatprep.subr.mxu0 0.0
      %730 = vmatpush1.msra.mxu0 0.0
      %731 = vmatprep.mubr.f32.mxu0 0.0
      %732 = vmatmul.mubr.f32.gmra.mrb[0].mxu0 %v665
      %v733 = vpop.f32.mrb[0].mxu0
      %v734 = vadd.f32 0.0, %v733
      %v735 = vpop.f32.mrb[0].mxu0
      %736 = vdwg.mxu0
      %v737 = vadd.f32 %v664, %v734
      %v738 = vxor.u32 %v737, 2147483648
      %v739 = vmul.f32 %v738, 1.442695
      %v740 = vpow.pop %v739
      %v741 = vadd.f32 %v740, 1.0
      %v742 = vrcp.pop %v741
      %v743 = vmul.f32 1.0, %v742
      %v744 = vtanh.pop %v737
      %v745 = vmul.f32 %v743, %v652
      %747 = vrot.lane.b32.xlu0 %v744, 64
      %v748 = vpop.permute.xlu0 %747
      %v750 = vmul.f32 %v743, %v748
      %752 = vrot.lane.b32.xlu0 %v750, 32
      %v753 = vpop.permute.xlu0 %752
      %v755 = vadd.f32 %v745, %v753
      %v756 = vtanh.pop %v755
      %758 = vrot.lane.b32.xlu0 %v756, 64
      %v759 = vpop.permute.xlu0 %758
      %v761 = vmul.f32 %v743, %v759
      %763 = vrot.lane.b32.xlu0 %v761, 32
      %v764 = vpop.permute.xlu0 %763
      %766 = vst.msk [vmem:[%s251 + $0x6] sm:$0x3] %vm456, %v764
      %v767 = vld [vmem:[#allocation2 + $0x8] sm:$0x3]
      %v768 = vsel %vm265, %v764, 0
      %770 = vmatprep.subr.mxu0 0.0
      %771 = vmatpush1.msra.mxu0 %v349
      %772 = vmatprep.subr.mxu0 0.0
      %773 = vmatpush1.msra.mxu0 %v350
      %774 = vmatprep.subr.mxu0 0.0
      %775 = vmatpush1.msra.mxu0 %v351
      %776 = vmatprep.subr.mxu0 0.0
      %777 = vmatpush1.msra.mxu0 %v352
      %778 = vmatprep.subr.mxu0 0.0
      %779 = vmatpush1.msra.mxu0 0.0
      %780 = vmatprep.subr.mxu0 0.0
      %781 = vmatpush1.msra.mxu0 0.0
      %782 = vmatprep.subr.mxu0 0.0
      %783 = vmatpush1.msra.mxu0 0.0
      %784 = vmatprep.subr.mxu0 0.0
      %785 = vmatpush1.msra.mxu0 0.0
      %786 = vmatprep.subr.mxu0 0.0
      %787 = vmatpush1.msra.mxu0 0.0
      %788 = vmatprep.subr.mxu0 0.0
      %789 = vmatpush1.msra.mxu0 0.0
      %790 = vmatprep.subr.mxu0 0.0
      %791 = vmatpush1.msra.mxu0 0.0
      %792 = vmatprep.subr.mxu0 0.0
      %793 = vmatpush1.msra.mxu0 0.0
      %794 = vmatprep.subr.mxu0 0.0
      %795 = vmatpush1.msra.mxu0 0.0
      %796 = vmatprep.subr.mxu0 0.0
      %797 = vmatpush1.msra.mxu0 0.0
      %798 = vmatprep.subr.mxu0 0.0
      %799 = vmatpush1.msra.mxu0 0.0
      %800 = vmatprep.subr.mxu0 0.0
      %801 = vmatpush1.msra.mxu0 0.0
      %802 = vmatprep.subr.mxu0 0.0
      %803 = vmatpush1.msra.mxu0 0.0
      %804 = vmatprep.subr.mxu0 0.0
      %805 = vmatpush1.msra.mxu0 0.0
      %806 = vmatprep.subr.mxu0 0.0
      %807 = vmatpush1.msra.mxu0 0.0
      %808 = vmatprep.subr.mxu0 0.0
      %809 = vmatpush1.msra.mxu0 0.0
      %810 = vmatprep.subr.mxu0 0.0
      %811 = vmatpush1.msra.mxu0 0.0
      %812 = vmatprep.subr.mxu0 0.0
      %813 = vmatpush1.msra.mxu0 0.0
      %814 = vmatprep.subr.mxu0 0.0
      %815 = vmatpush1.msra.mxu0 0.0
      %816 = vmatprep.subr.mxu0 0.0
      %817 = vmatpush1.msra.mxu0 0.0
      %818 = vmatprep.subr.mxu0 0.0
      %819 = vmatpush1.msra.mxu0 0.0
      %820 = vmatprep.subr.mxu0 0.0
      %821 = vmatpush1.msra.mxu0 0.0
      %822 = vmatprep.subr.mxu0 0.0
      %823 = vmatpush1.msra.mxu0 0.0
      %824 = vmatprep.subr.mxu0 0.0
      %825 = vmatpush1.msra.mxu0 0.0
      %826 = vmatprep.subr.mxu0 0.0
      %827 = vmatpush1.msra.mxu0 0.0
      %828 = vmatprep.subr.mxu0 0.0
      %829 = vmatpush1.msra.mxu0 0.0
      %830 = vmatprep.subr.mxu0 0.0
      %831 = vmatpush1.msra.mxu0 0.0
      %832 = vmatprep.subr.mxu0 0.0
      %833 = vmatpush1.msra.mxu0 0.0
      %834 = vmatprep.mubr.f32.mxu0 0.0
      %835 = vmatmul.mubr.f32.gmra.mrb[0].mxu0 %v768
      %v836 = vpop.f32.mrb[0].mxu0
      %v837 = vadd.f32 0.0, %v836
      %v838 = vpop.f32.mrb[0].mxu0
      %839 = vdwg.mxu0
      %v840 = vadd.f32 %v767, %v837
      %v841 = vxor.u32 %v840, 2147483648
      %v842 = vmul.f32 %v841, 1.442695
      %v843 = vpow.pop %v842
      %v844 = vadd.f32 %v843, 1.0
      %v845 = vrcp.pop %v844
      %v846 = vmul.f32 1.0, %v845
      %v847 = vtanh.pop %v840
      %v848 = vmul.f32 %v846, %v755
      %850 = vrot.lane.b32.xlu0 %v847, 64
      %v851 = vpop.permute.xlu0 %850
      %v853 = vmul.f32 %v846, %v851
      %855 = vrot.lane.b32.xlu0 %v853, 32
      %v856 = vpop.permute.xlu0 %855
      %v858 = vadd.f32 %v848, %v856
      %v859 = vtanh.pop %v858
      %861 = vrot.lane.b32.xlu0 %v859, 64
      %v862 = vpop.permute.xlu0 %861
      %v864 = vmul.f32 %v846, %v862
      %866 = vrot.lane.b32.xlu0 %v864, 32
      %v867 = vpop.permute.xlu0 %866
      %869 = vst.msk [vmem:[%s251 + $0x8] sm:$0x3] %vm456, %v867
      %v870 = vld [vmem:[#allocation2 + $0xa] sm:$0x3]
      %v871 = vsel %vm265, %v867, 0
      %873 = vmatprep.subr.mxu0 0.0
      %874 = vmatpush1.msra.mxu0 %v349
      %875 = vmatprep.subr.mxu0 0.0
      %876 = vmatpush1.msra.mxu0 %v350
      %877 = vmatprep.subr.mxu0 0.0
      %878 = vmatpush1.msra.mxu0 %v351
      %879 = vmatprep.subr.mxu0 0.0
      %880 = vmatpush1.msra.mxu0 %v352
      %881 = vmatprep.subr.mxu0 0.0
      %882 = vmatpush1.msra.mxu0 0.0
      %883 = vmatprep.subr.mxu0 0.0
      %884 = vmatpush1.msra.mxu0 0.0
      %885 = vmatprep.subr.mxu0 0.0
      %886 = vmatpush1.msra.mxu0 0.0
      %887 = vmatprep.subr.mxu0 0.0
      %888 = vmatpush1.msra.mxu0 0.0
      %889 = vmatprep.subr.mxu0 0.0
      %890 = vmatpush1.msra.mxu0 0.0
      %891 = vmatprep.subr.mxu0 0.0
      %892 = vmatpush1.msra.mxu0 0.0
      %893 = vmatprep.subr.mxu0 0.0
      %894 = vmatpush1.msra.mxu0 0.0
      %895 = vmatprep.subr.mxu0 0.0
      %896 = vmatpush1.msra.mxu0 0.0
      %897 = vmatprep.subr.mxu0 0.0
      %898 = vmatpush1.msra.mxu0 0.0
      %899 = vmatprep.subr.mxu0 0.0
      %900 = vmatpush1.msra.mxu0 0.0
      %901 = vmatprep.subr.mxu0 0.0
      %902 = vmatpush1.msra.mxu0 0.0
      %903 = vmatprep.subr.mxu0 0.0
      %904 = vmatpush1.msra.mxu0 0.0
      %905 = vmatprep.subr.mxu0 0.0
      %906 = vmatpush1.msra.mxu0 0.0
      %907 = vmatprep.subr.mxu0 0.0
      %908 = vmatpush1.msra.mxu0 0.0
      %909 = vmatprep.subr.mxu0 0.0
      %910 = vmatpush1.msra.mxu0 0.0
      %911 = vmatprep.subr.mxu0 0.0
      %912 = vmatpush1.msra.mxu0 0.0
      %913 = vmatprep.subr.mxu0 0.0
      %914 = vmatpush1.msra.mxu0 0.0
      %915 = vmatprep.subr.mxu0 0.0
      %916 = vmatpush1.msra.mxu0 0.0
      %917 = vmatprep.subr.mxu0 0.0
      %918 = vmatpush1.msra.mxu0 0.0
      %919 = vmatprep.subr.mxu0 0.0
      %920 = vmatpush1.msra.mxu0 0.0
      %921 = vmatprep.subr.mxu0 0.0
      %922 = vmatpush1.msra.mxu0 0.0
      %923 = vmatprep.subr.mxu0 0.0
      %924 = vmatpush1.msra.mxu0 0.0
      %925 = vmatprep.subr.mxu0 0.0
      %926 = vmatpush1.msra.mxu0 0.0
      %927 = vmatprep.subr.mxu0 0.0
      %928 = vmatpush1.msra.mxu0 0.0
      %929 = vmatprep.subr.mxu0 0.0
      %930 = vmatpush1.msra.mxu0 0.0
      %931 = vmatprep.subr.mxu0 0.0
      %932 = vmatpush1.msra.mxu0 0.0
      %933 = vmatprep.subr.mxu0 0.0
      %934 = vmatpush1.msra.mxu0 0.0
      %935 = vmatprep.subr.mxu0 0.0
      %936 = vmatpush1.msra.mxu0 0.0
      %937 = vmatprep.mubr.f32.mxu0 0.0
      %938 = vmatmul.mubr.f32.gmra.mrb[0].mxu0 %v871
      %v939 = vpop.f32.mrb[0].mxu0
      %v940 = vadd.f32 0.0, %v939
      %v941 = vpop.f32.mrb[0].mxu0
      %942 = vdwg.mxu0
      %v943 = vadd.f32 %v870, %v940
      %v944 = vxor.u32 %v943, 2147483648
      %v945 = vmul.f32 %v944, 1.442695
      %v946 = vpow.pop %v945
      %v947 = vadd.f32 %v946, 1.0
      %v948 = vrcp.pop %v947
      %v949 = vmul.f32 1.0, %v948
      %v950 = vtanh.pop %v943
      %v951 = vmul.f32 %v949, %v858
      %953 = vrot.lane.b32.xlu0 %v950, 64
      %v954 = vpop.permute.xlu0 %953
      %v956 = vmul.f32 %v949, %v954
      %958 = vrot.lane.b32.xlu0 %v956, 32
      %v959 = vpop.permute.xlu0 %958
      %v961 = vadd.f32 %v951, %v959
      %v962 = vtanh.pop %v961
      %964 = vrot.lane.b32.xlu0 %v962, 64
      %v965 = vpop.permute.xlu0 %964
      %v967 = vmul.f32 %v949, %v965
      %969 = vrot.lane.b32.xlu0 %v967, 32
      %v970 = vpop.permute.xlu0 %969
      %972 = vst.msk [vmem:[%s251 + $0xa] sm:$0x3] %vm456, %v970
      %v973 = vld [vmem:[#allocation2 + $0xc] sm:$0x3]
      %v974 = vsel %vm265, %v970, 0
      %976 = vmatprep.subr.mxu0 0.0
      %977 = vmatpush1.msra.mxu0 %v349
      %978 = vmatprep.subr.mxu0 0.0
      %979 = vmatpush1.msra.mxu0 %v350
      %980 = vmatprep.subr.mxu0 0.0
      %981 = vmatpush1.msra.mxu0 %v351
      %982 = vmatprep.subr.mxu0 0.0
      %983 = vmatpush1.msra.mxu0 %v352
      %984 = vmatprep.subr.mxu0 0.0
      %985 = vmatpush1.msra.mxu0 0.0
      %986 = vmatprep.subr.mxu0 0.0
      %987 = vmatpush1.msra.mxu0 0.0
      %988 = vmatprep.subr.mxu0 0.0
      %989 = vmatpush1.msra.mxu0 0.0
      %990 = vmatprep.subr.mxu0 0.0
      %991 = vmatpush1.msra.mxu0 0.0
      %992 = vmatprep.subr.mxu0 0.0
      %993 = vmatpush1.msra.mxu0 0.0
      %994 = vmatprep.subr.mxu0 0.0
      %995 = vmatpush1.msra.mxu0 0.0
      %996 = vmatprep.subr.mxu0 0.0
      %997 = vmatpush1.msra.mxu0 0.0
      %998 = vmatprep.subr.mxu0 0.0
      %999 = vmatpush1.msra.mxu0 0.0
      %1000 = vmatprep.subr.mxu0 0.0
      %1001 = vmatpush1.msra.mxu0 0.0
      %1002 = vmatprep.subr.mxu0 0.0
      %1003 = vmatpush1.msra.mxu0 0.0
      %1004 = vmatprep.subr.mxu0 0.0
      %1005 = vmatpush1.msra.mxu0 0.0
      %1006 = vmatprep.subr.mxu0 0.0
      %1007 = vmatpush1.msra.mxu0 0.0
      %1008 = vmatprep.subr.mxu0 0.0
      %1009 = vmatpush1.msra.mxu0 0.0
      %1010 = vmatprep.subr.mxu0 0.0
      %1011 = vmatpush1.msra.mxu0 0.0
      %1012 = vmatprep.subr.mxu0 0.0
      %1013 = vmatpush1.msra.mxu0 0.0
      %1014 = vmatprep.subr.mxu0 0.0
      %1015 = vmatpush1.msra.mxu0 0.0
      %1016 = vmatprep.subr.mxu0 0.0
      %1017 = vmatpush1.msra.mxu0 0.0
      %1018 = vmatprep.subr.mxu0 0.0
      %1019 = vmatpush1.msra.mxu0 0.0
      %1020 = vmatprep.subr.mxu0 0.0
      %1021 = vmatpush1.msra.mxu0 0.0
      %1022 = vmatprep.subr.mxu0 0.0
      %1023 = vmatpush1.msra.mxu0 0.0
      %1024 = vmatprep.subr.mxu0 0.0
      %1025 = vmatpush1.msra.mxu0 0.0
      %1026 = vmatprep.subr.mxu0 0.0
      %1027 = vmatpush1.msra.mxu0 0.0
      %1028 = vmatprep.subr.mxu0 0.0
      %1029 = vmatpush1.msra.mxu0 0.0
      %1030 = vmatprep.subr.mxu0 0.0
      %1031 = vmatpush1.msra.mxu0 0.0
      %1032 = vmatprep.subr.mxu0 0.0
      %1033 = vmatpush1.msra.mxu0 0.0
      %1034 = vmatprep.subr.mxu0 0.0
      %1035 = vmatpush1.msra.mxu0 0.0
      %1036 = vmatprep.subr.mxu0 0.0
      %1037 = vmatpush1.msra.mxu0 0.0
      %1038 = vmatprep.subr.mxu0 0.0
      %1039 = vmatpush1.msra.mxu0 0.0
      %1040 = vmatprep.mubr.f32.mxu0 0.0
      %1041 = vmatmul.mubr.f32.gmra.mrb[0].mxu0 %v974
      %v1042 = vpop.f32.mrb[0].mxu0
      %v1043 = vadd.f32 0.0, %v1042
      %v1044 = vpop.f32.mrb[0].mxu0
      %1045 = vdwg.mxu0
      %v1046 = vadd.f32 %v973, %v1043
      %v1047 = vxor.u32 %v1046, 2147483648
      %v1048 = vmul.f32 %v1047, 1.442695
      %v1049 = vpow.pop %v1048
      %v1050 = vadd.f32 %v1049, 1.0
      %v1051 = vrcp.pop %v1050
      %v1052 = vmul.f32 1.0, %v1051
      %v1053 = vtanh.pop %v1046
      %v1054 = vmul.f32 %v1052, %v961
      %1056 = vrot.lane.b32.xlu0 %v1053, 64
      %v1057 = vpop.permute.xlu0 %1056
      %v1059 = vmul.f32 %v1052, %v1057
      %1061 = vrot.lane.b32.xlu0 %v1059, 32
      %v1062 = vpop.permute.xlu0 %1061
      %v1064 = vadd.f32 %v1054, %v1062
      %v1065 = vtanh.pop %v1064
      %1067 = vrot.lane.b32.xlu0 %v1065, 64
      %v1068 = vpop.permute.xlu0 %1067
      %v1070 = vmul.f32 %v1052, %v1068
      %1072 = vrot.lane.b32.xlu0 %v1070, 32
      %v1073 = vpop.permute.xlu0 %1072
      %1075 = vst.msk [vmem:[%s251 + $0xc] sm:$0x3] %vm456, %v1073
      %v1076 = vld [vmem:[#allocation2 + $0xe] sm:$0x3]
      %v1077 = vsel %vm265, %v1073, 0
      %1079 = vmatprep.subr.mxu0 0.0
      %1080 = vmatpush1.msra.mxu0 %v349
      %1081 = vmatprep.subr.mxu0 0.0
      %1082 = vmatpush1.msra.mxu0 %v350
      %1083 = vmatprep.subr.mxu0 0.0
      %1084 = vmatpush1.msra.mxu0 %v351
      %1085 = vmatprep.subr.mxu0 0.0
      %1086 = vmatpush1.msra.mxu0 %v352
      %1087 = vmatprep.subr.mxu0 0.0
      %1088 = vmatpush1.msra.mxu0 0.0
      %1089 = vmatprep.subr.mxu0 0.0
      %1090 = vmatpush1.msra.mxu0 0.0
      %1091 = vmatprep.subr.mxu0 0.0
      %1092 = vmatpush1.msra.mxu0 0.0
      %1093 = vmatprep.subr.mxu0 0.0
      %1094 = vmatpush1.msra.mxu0 0.0
      %1095 = vmatprep.subr.mxu0 0.0
      %1096 = vmatpush1.msra.mxu0 0.0
      %1097 = vmatprep.subr.mxu0 0.0
      %1098 = vmatpush1.msra.mxu0 0.0
      %1099 = vmatprep.subr.mxu0 0.0
      %1100 = vmatpush1.msra.mxu0 0.0
      %1101 = vmatprep.subr.mxu0 0.0
      %1102 = vmatpush1.msra.mxu0 0.0
      %1103 = vmatprep.subr.mxu0 0.0
      %1104 = vmatpush1.msra.mxu0 0.0
      %1105 = vmatprep.subr.mxu0 0.0
      %1106 = vmatpush1.msra.mxu0 0.0
      %1107 = vmatprep.subr.mxu0 0.0
      %1108 = vmatpush1.msra.mxu0 0.0
      %1109 = vmatprep.subr.mxu0 0.0
      %1110 = vmatpush1.msra.mxu0 0.0
      %1111 = vmatprep.subr.mxu0 0.0
      %1112 = vmatpush1.msra.mxu0 0.0
      %1113 = vmatprep.subr.mxu0 0.0
      %1114 = vmatpush1.msra.mxu0 0.0
      %1115 = vmatprep.subr.mxu0 0.0
      %1116 = vmatpush1.msra.mxu0 0.0
      %1117 = vmatprep.subr.mxu0 0.0
      %1118 = vmatpush1.msra.mxu0 0.0
      %1119 = vmatprep.subr.mxu0 0.0
      %1120 = vmatpush1.msra.mxu0 0.0
      %1121 = vmatprep.subr.mxu0 0.0
      %1122 = vmatpush1.msra.mxu0 0.0
      %1123 = vmatprep.subr.mxu0 0.0
      %1124 = vmatpush1.msra.mxu0 0.0
      %1125 = vmatprep.subr.mxu0 0.0
      %1126 = vmatpush1.msra.mxu0 0.0
      %1127 = vmatprep.subr.mxu0 0.0
      %1128 = vmatpush1.msra.mxu0 0.0
      %1129 = vmatprep.subr.mxu0 0.0
      %1130 = vmatpush1.msra.mxu0 0.0
      %1131 = vmatprep.subr.mxu0 0.0
      %1132 = vmatpush1.msra.mxu0 0.0
      %1133 = vmatprep.subr.mxu0 0.0
      %1134 = vmatpush1.msra.mxu0 0.0
      %1135 = vmatprep.subr.mxu0 0.0
      %1136 = vmatpush1.msra.mxu0 0.0
      %1137 = vmatprep.subr.mxu0 0.0
      %1138 = vmatpush1.msra.mxu0 0.0
      %1139 = vmatprep.subr.mxu0 0.0
      %1140 = vmatpush1.msra.mxu0 0.0
      %1141 = vmatprep.subr.mxu0 0.0
      %1142 = vmatpush1.msra.mxu0 0.0
      %1143 = vmatprep.mubr.f32.mxu0 0.0
      %1144 = vmatmul.mubr.f32.gmra.mrb[0].mxu0 %v1077
      %v1145 = vpop.f32.mrb[0].mxu0
      %v1146 = vadd.f32 0.0, %v1145
      %v1147 = vpop.f32.mrb[0].mxu0
      %1148 = vdwg.mxu0
      %v1149 = vadd.f32 %v1076, %v1146
      %v1150 = vxor.u32 %v1149, 2147483648
      %v1151 = vmul.f32 %v1150, 1.442695
      %v1152 = vpow.pop %v1151
      %v1153 = vadd.f32 %v1152, 1.0
      %v1154 = vrcp.pop %v1153
      %v1155 = vmul.f32 1.0, %v1154
      %v1156 = vtanh.pop %v1149
      %v1157 = vmul.f32 %v1155, %v1064
      %1159 = vrot.lane.b32.xlu0 %v1156, 64
      %v1160 = vpop.permute.xlu0 %1159
      %v1162 = vmul.f32 %v1155, %v1160
      %1164 = vrot.lane.b32.xlu0 %v1162, 32
      %v1165 = vpop.permute.xlu0 %1164
      %v1167 = vadd.f32 %v1157, %v1165
      %v1168 = vtanh.pop %v1167
      %1170 = vrot.lane.b32.xlu0 %v1168, 64
      %v1171 = vpop.permute.xlu0 %1170
      %v1173 = vmul.f32 %v1155, %v1171
      %1175 = vrot.lane.b32.xlu0 %v1173, 32
      %v1176 = vpop.permute.xlu0 %1175
      %1178 = vst.msk [vmem:[%s251 + $0xe] sm:$0x3] %vm456, %v1176
      %p1179 = scmp.lt.s32.totalorder %s15, 1
      %s1180 = scalar_select %p1179, %s15, 1
      %s1181 = smul.addr %s1180, 2
      %s1182 = smul.addr %s1181, 8
      %s1183 = scalar_lea.vmem %s4, %s1182
      // Predicated region
      $region37: #{g_clstm_forward.2} parent=35 // pred_check
        %p1184 = pneg %p137
      $region38: #{g_clstm_forward.2} parent=35 // pred_check_branch
        %1186 = sbr.rel (%p1184) target = $region40
      $region39: #{g_clstm_forward.2} parent=35 // pred_region
        _
      $region40: #{g_clstm_forward.2} parent=35 // pred_fallthru
        _
    $region36: #{g_clstm_forward.2} parent=5 // pred_fallthru
      _
    %p1187 = scmp.le.s32.totalorder 2, %s10
    // Predicated region
    $region41: #{g_clstm_forward.2} parent=5 // pred_check
      %p1188 = pneg %p1187
    $region42: #{g_clstm_forward.2} parent=5 // pred_check_branch
      %1190 = sbr.rel (%p1188) target = $region44
    $region43: #{g_clstm_forward.2} parent=5 // pred_region
      %s1191 = ssub.s32 %s10, 2
      // Predicated region
      $region45: #{g_clstm_forward.2} parent=43 // pred_check
        %p1192 = pneg %p143
      $region46: #{g_clstm_forward.2} parent=43 // pred_check_branch
        %1194 = sbr.rel (%p1192) target = $region48
      $region47: #{g_clstm_forward.2} parent=43 // pred_region
        %p1195 = scmp.lt.s32.totalorder %s16, 1
        %s1196 = scalar_select %p1195, %s16, 1
        %s1197 = smul.addr %s1196, 2
        %s1198 = smul.addr %s1197, 8
        %s1199 = scalar_lea.vmem %s4, %s1198
      $region48: #{g_clstm_forward.2} parent=43 // pred_fallthru
        _
    $region44: #{g_clstm_forward.2} parent=5 // pred_fallthru
      _
  $region6: #{g_clstm_forward.2} parent=0 // loop_footer
    %s14 = sadd.s32 1, %s10
  $region7: #{g_clstm_forward.2} parent=0 // loop_footer_branch
    %9 = sbr.rel target = $region3
  $region8: #{g_clstm_forward.2} parent=0 // loop_exit
    _

</llo_original>
